<compile_context>
chip_gen: v7x
topology: tpu7x:2x2x1
jax: 0.10.0
libtpu: 0.0.40
codegen_flags: <defaults>
</compile_context>

<pallas_src>
import functools

import jax
import jax.numpy as jnp
from jax.experimental import pallas as pl
from jax.experimental.pallas import tpu as pltpu

_VMEM_LIMIT = 48 * 1024 * 1024         # safe on v5e/v6e (128 MiB) and v7x (64 MiB / TC)
_VALS_BLOCK_BUDGET = 4 * 1024 * 1024   # cap on the largest single block (gathered values)


def _pack_rows_lanes(m_pad):
    """Lane-dense (rows, lanes) factorisation: lanes % 128 == 0, rows % 8 == 0,
    preferring wide (>=512) lanes.  m_pad must be a multiple of 1024."""
    assert m_pad % 1024 == 0
    for lanes in (2048, 1024, 512, 256, 128):
        if m_pad % lanes == 0:
            rows = m_pad // lanes
            if rows % 8 == 0:
                return rows, lanes
    raise AssertionError("unreachable: m_pad is a multiple of 1024")


def _choose_row_tile(rows, lanes, n_chan, itemsize):
    """Largest row tile TR (multiple of the dtype's sublane granularity) dividing
    `rows` such that the gathered-values block (n_chan, 8, TR, lanes) fits the budget."""
    step = max(8, 32 // max(itemsize, 1))
    if rows <= step:
        return rows
    per_row = n_chan * 8 * lanes * itemsize
    best = None
    tr = step
    while tr <= rows:
        if rows % tr == 0 and tr * per_row <= _VALS_BLOCK_BUDGET:
            best = tr
        tr += step
    if best is None:
        best = step if rows % step == 0 else rows
    return best


# --------------------------- Pallas kernels ---------------------------------

def _coord_kernel(grid_ref, flow_ref, base_ref, wgt_ref, *, dim_d, dim_h, dim_w):
    """Sampling coords -> clamped base corner flat index + 6 per-axis corner weights.

    grid_ref: (3, TR, L) f32   identity grid (d, h, w planes)
    flow_ref: (3, TR, L) f32   displacement field (d, h, w planes)
    base_ref: (TR, L)    i32   flat index of the base corner; clamped per-axis to
                               [0, size-2] so base + {0,1,W,W+1,HW,...} is in-bounds
    wgt_ref:  (6, TR, L) f32   [wd0, wd1, wh0, wh1, ww0, ww1]; an out-of-volume corner
                               contributes weight 0 (grid_sample zeros padding)
    """
    def axis(p, size):
        f = jnp.floor(p)
        i0 = f.astype(jnp.int32)
        t = p - f
        b0 = jnp.clip(i0, 0, size - 2)              # base corner index along this axis

        def w_at(a):                                 # trilinear weight landing on index a
            return (jnp.where(a == i0, 1.0 - t, 0.0)
                    + jnp.where(a == i0 + 1, t, 0.0))

        return b0, w_at(b0), w_at(b0 + 1)

    bd, wd0, wd1 = axis(grid_ref[0] + flow_ref[0], dim_d)
    bh, wh0, wh1 = axis(grid_ref[1] + flow_ref[1], dim_h)
    bw, ww0, ww1 = axis(grid_ref[2] + flow_ref[2], dim_w)

    base_ref[...] = (bd * dim_h + bh) * dim_w + bw
    wgt_ref[0] = wd0
    wgt_ref[1] = wd1
    wgt_ref[2] = wh0
    wgt_ref[3] = wh1
    wgt_ref[4] = ww0
    wgt_ref[5] = ww1


def _combine_kernel(wgt_ref, vals_ref, out_ref):
    """out[c] = sum over the 8 corners of (axis-weight product) * corner value.

    wgt_ref:  (6, TR, L)    f32         [wd0, wd1, wh0, wh1, ww0, ww1]
    vals_ref: (C, 8, TR, L) src dtype   gathered corner values, corner-major (dd,dh,dw)
    out_ref:  (C, TR, L)    src dtype
    """
    n_chan = out_ref.shape[0]
    acc = [None] * n_chan
    corner = 0
    for dd in (0, 1):
        wd = wgt_ref[dd]
        for dh in (0, 1):
            wdh = wd * wgt_ref[2 + dh]
            for dw in (0, 1):
                wc = wdh * wgt_ref[4 + dw]           # weight plane for this corner
                for c in range(n_chan):              # corners outer, channels inner
                    v = vals_ref[c, corner].astype(jnp.float32)
                    term = wc * v
                    acc[c] = term if acc[c] is None else acc[c] + term
                corner += 1
    for c in range(n_chan):
        out_ref[c] = acc[c].astype(out_ref.dtype)


# ------------------------------ wrapper --------------------------------------

def spatial_transformer(src, flow):
    """voxelmorph SpatialTransformer forward (3-D, bilinear, align_corners=True).

    src:  (B, C, D, H, W)   any float dtype (kept in this dtype through the gather)
    flow: (B, 3, D, H, W)   displacement in voxels; channel i displaces axis i (D,H,W)
    returns (B, C, D, H, W) in src.dtype.
    """
    b, c, d, h, w = src.shape
    assert flow.shape == (b, 3, d, h, w), flow.shape
    # The torch module divides by (size - 1); size-1 spatial axes are out of scope.
    assert min(d, h, w) >= 2, "spatial dims must be >= 2"

    m = d * h * w
    m_pad = -(-m // 1024) * 1024
    rows, lanes = _pack_rows_lanes(m_pad)
    itemsize = jnp.dtype(src.dtype).itemsize
    tr = _choose_row_tile(rows, lanes, c, itemsize)
    n_tiles = rows // tr

    # Identity grid (the module's registered buffer), flattened lane-dense and padded.
    gd, gh, gw = jnp.meshgrid(jnp.arange(d, dtype=jnp.float32),
                              jnp.arange(h, dtype=jnp.float32),
                              jnp.arange(w, dtype=jnp.float32), indexing="ij")
    grid_flat = jnp.stack([gd, gh, gw]).reshape(3, m)
    grid_rl = jnp.pad(grid_flat, ((0, 0), (0, m_pad - m))).reshape(3, rows, lanes)
    flow_rl = jnp.pad(flow.astype(jnp.float32).reshape(b, 3, m),
                      ((0, 0), (0, 0), (0, m_pad - m))).reshape(b, 3, rows, lanes)

    cparams = pltpu.CompilerParams(dimension_semantics=("parallel", "parallel"),
                                   vmem_limit_bytes=_VMEM_LIMIT)

    # Kernel 1: fused coordinate math -> base index + 6 axis weights.
    base, wgt = pl.pallas_call(
        functools.partial(_coord_kernel, dim_d=d, dim_h=h, dim_w=w),
        out_shape=(jax.ShapeDtypeStruct((b, rows, lanes), jnp.int32),
                   jax.ShapeDtypeStruct((b, 6, rows, lanes), jnp.float32)),
        grid_spec=pltpu.PrefetchScalarGridSpec(
            num_scalar_prefetch=0,
            grid=(b, n_tiles),
            in_specs=[pl.BlockSpec((3, tr, lanes), lambda i, t: (0, t, 0)),
                      pl.BlockSpec((None, 3, tr, lanes), lambda i, t: (i, 0, t, 0))],
            out_specs=(pl.BlockSpec((None, tr, lanes), lambda i, t: (i, t, 0)),
                       pl.BlockSpec((None, 6, tr, lanes), lambda i, t: (i, 0, t, 0))),
        ),
        compiler_params=cparams,
    )(grid_rl, flow_rl)

    # TODO(synk): the data-dependent 8-corner gather stays in XLA -- Pallas/Mosaic has
    # no general per-element gather over a whole (D*H*W)-sized VMEM-resident volume,
    # so the reviewer's fully fused gather+combine kernel is not expressible in-kernel.
    offsets = jnp.asarray([(dd * h + dh) * w + dw
                           for dd in (0, 1) for dh in (0, 1) for dw in (0, 1)],
                          dtype=jnp.int32)
    idx8 = base[:, None, :, :] + offsets[None, :, None, None]        # (B, 8, rows, lanes)
    src_flat = src.reshape(b, c, m)                                   # keep source dtype
    vals = jax.vmap(lambda vol, ind: jnp.take(vol, ind, axis=1))(src_flat, idx8)
    # vals: (B, C, 8, rows, lanes) in src.dtype

    # Kernel 2: fused 8-corner weight construction + weighted combine.
    out_rl = pl.pallas_call(
        _combine_kernel,
        out_shape=jax.ShapeDtypeStruct((b, c, rows, lanes), src.dtype),
        grid_spec=pltpu.PrefetchScalarGridSpec(
            num_scalar_prefetch=0,
            grid=(b, n_tiles),
            in_specs=[pl.BlockSpec((None, 6, tr, lanes), lambda i, t: (i, 0, t, 0)),
                      pl.BlockSpec((None, c, 8, tr, lanes), lambda i, t: (i, 0, 0, t, 0))],
            out_specs=pl.BlockSpec((None, c, tr, lanes), lambda i, t: (i, 0, t, 0)),
        ),
        compiler_params=cparams,
    )(wgt, vals)

    return out_rl.reshape(b, c, m_pad)[:, :, :m].reshape(b, c, d, h, w)


# ----------------------- pure-JAX reference (for checking) -------------------

def _reference_spatial_transformer(src, flow):
    """Op-for-op port of the PyTorch module (incl. the normalize ->
    grid_sample un-normalize round trip), bilinear, align_corners=True, zeros padding."""
    b, c, d, h, w = src.shape
    sizes = (d, h, w)
    gd, gh, gw = jnp.meshgrid(jnp.arange(d, dtype=jnp.float32),
                              jnp.arange(h, dtype=jnp.float32),
                              jnp.arange(w, dtype=jnp.float32), indexing="ij")
    grid = jnp.stack([gd, gh, gw])[None]                                  # (1,3,D,H,W)
    new_locs = grid + flow
    new_locs = jnp.stack([2.0 * (new_locs[:, i] / (sizes[i] - 1) - 0.5)
                          for i in range(3)], axis=1)
    # After permute + [..., [2,1,0]] grid_sample's (x,y,z) are the (W,H,D) coords;
    # un-normalise with align_corners=True.
    pw = (new_locs[:, 2] + 1.0) * 0.5 * (w - 1)
    ph = (new_locs[:, 1] + 1.0) * 0.5 * (h - 1)
    pd = (new_locs[:, 0] + 1.0) * 0.5 * (d - 1)
    fd, fh, fw = jnp.floor(pd), jnp.floor(ph), jnp.floor(pw)
    td, th, tw = pd - fd, ph - fh, pw - fw
    i0, j0, k0 = fd.astype(jnp.int32), fh.astype(jnp.int32), fw.astype(jnp.int32)
    src_flat = src.reshape(b, c, -1)
    out = jnp.zeros_like(src)
    for dd in (0, 1):
        for dh in (0, 1):
            for dw in (0, 1):
                ad, ah, aw = i0 + dd, j0 + dh, k0 + dw
                valid = ((ad >= 0) & (ad < d) & (ah >= 0) & (ah < h)
                         & (aw >= 0) & (aw < w))
                cd = jnp.clip(ad, 0, d - 1)
                ch = jnp.clip(ah, 0, h - 1)
                cw = jnp.clip(aw, 0, w - 1)
                flat = (cd * h + ch) * w + cw                             # (B,D,H,W)
                vals = jax.vmap(lambda v, ix: jnp.take(v, ix.reshape(-1), axis=1))(
                    src_flat, flat).reshape(b, c, d, h, w)
                wt = ((td if dd else 1.0 - td) * (th if dh else 1.0 - th)
                      * (tw if dw else 1.0 - tw))
                out = out + jnp.where(valid, wt, 0.0)[:, None] * vals
    return out


# ---------------------------------- main --------------------------------------

if __name__ == "__main__":
    key = jax.random.PRNGKey(0)
    ksrc, kflow = jax.random.split(key)

    B, C, D, H, W = 2, 2, 16, 16, 16
    src = jax.random.normal(ksrc, (B, C, D, H, W), jnp.float32)
    # Displacements of a few voxels; some samples land outside the volume to
    # exercise the zeros-padding path.
    flow = 3.0 * jax.random.normal(kflow, (B, 3, D, H, W), jnp.float32)

    warp = jax.jit(spatial_transformer)
    out = warp(src, flow)
    jax.block_until_ready(out)

    assert out.shape == (B, C, D, H, W), out.shape
    assert out.dtype == src.dtype
    assert bool(jnp.all(jnp.isfinite(out)))

    ref = _reference_spatial_transformer(src, flow)
    err = float(jnp.max(jnp.abs(out - ref)))
    assert err < 1e-3, f"mismatch vs grid_sample reference: {err}"

    print("KERNEL_OK")
</pallas_src>

<mosaic_0001>
module attributes {stable_mosaic.version = 11 : i64} {
  func.func @_coord_kernel(%arg0: i32, %arg1: i32, %arg2: memref<3x8x512xf32, #tpu.memory_space<vmem>>, %arg3: memref<1x3x8x512xf32, #tpu.memory_space<vmem>>, %arg4: memref<1x8x512xi32, #tpu.memory_space<vmem>>, %arg5: memref<1x6x8x512xf32, #tpu.memory_space<vmem>>) attributes {dimension_semantics = [#tpu.dimension_semantics<parallel>, #tpu.dimension_semantics<parallel>], iteration_bounds = array<i64: 2, 1>, scalar_prefetch = 0 : i64, scratch_operands = 0 : i64, tpu.core_type = #tpu.core_type<tc>, window_params = [{transform_indices = @transform_0, window_bounds = array<i64: 3, 8, 512>}, {transform_indices = @transform_1, window_bounds = array<i64: 1, 3, 8, 512>}, {transform_indices = @transform_2, window_bounds = array<i64: 1, 8, 512>}, {transform_indices = @transform_3, window_bounds = array<i64: 1, 6, 8, 512>}]} {
    %c0 = arith.constant 0 : index
    %c0_0 = arith.constant 0 : index
    %c0_1 = arith.constant 0 : index
    %0 = vector.load %arg2[%c0, %c0_0, %c0_1] : memref<3x8x512xf32, #tpu.memory_space<vmem>>, vector<1x8x512xf32>
    %1 = vector.shape_cast %0 : vector<1x8x512xf32> to vector<8x512xf32>
    %c0_2 = arith.constant 0 : index
    %c0_3 = arith.constant 0 : index
    %c0_4 = arith.constant 0 : index
    %c0_5 = arith.constant 0 : index
    %2 = vector.load %arg3[%c0_2, %c0_3, %c0_4, %c0_5] : memref<1x3x8x512xf32, #tpu.memory_space<vmem>>, vector<1x1x8x512xf32>
    %3 = vector.shape_cast %2 : vector<1x1x8x512xf32> to vector<8x512xf32>
    %4 = arith.addf %1, %3 : vector<8x512xf32>
    %5 = math.floor %4 : vector<8x512xf32>
    %6 = arith.fptosi %5 : vector<8x512xf32> to vector<8x512xi32>
    %7 = arith.subf %4, %5 : vector<8x512xf32>
    %c0_i32 = arith.constant 0 : i32
    %c14_i32 = arith.constant 14 : i32
    %8 = vector.broadcast %c0_i32 : i32 to vector<8x512xi32>
    %9 = arith.maxsi %8, %6 : vector<8x512xi32>
    %10 = vector.broadcast %c14_i32 : i32 to vector<8x512xi32>
    %11 = arith.minsi %10, %9 : vector<8x512xi32>
    %12 = arith.cmpi eq, %11, %6 : vector<8x512xi32>
    %cst = arith.constant 1.000000e+00 : f32
    %13 = vector.broadcast %cst : f32 to vector<8x512xf32>
    %14 = arith.subf %13, %7 : vector<8x512xf32>
    %cst_6 = arith.constant 0.000000e+00 : f32
    %15 = vector.broadcast %cst_6 : f32 to vector<8x512xf32>
    %16 = arith.select %12, %14, %15 : vector<8x512xi1>, vector<8x512xf32>
    %c1_i32 = arith.constant 1 : i32
    %17 = vector.broadcast %c1_i32 : i32 to vector<8x512xi32>
    %18 = arith.addi %6, %17 : vector<8x512xi32>
    %19 = arith.cmpi eq, %11, %18 : vector<8x512xi32>
    %cst_7 = arith.constant 0.000000e+00 : f32
    %20 = vector.broadcast %cst_7 : f32 to vector<8x512xf32>
    %21 = arith.select %19, %7, %20 : vector<8x512xi1>, vector<8x512xf32>
    %22 = arith.addf %16, %21 : vector<8x512xf32>
    %c1_i32_8 = arith.constant 1 : i32
    %23 = vector.broadcast %c1_i32_8 : i32 to vector<8x512xi32>
    %24 = arith.addi %11, %23 : vector<8x512xi32>
    %25 = arith.cmpi eq, %24, %6 : vector<8x512xi32>
    %cst_9 = arith.constant 1.000000e+00 : f32
    %26 = vector.broadcast %cst_9 : f32 to vector<8x512xf32>
    %27 = arith.subf %26, %7 : vector<8x512xf32>
    %cst_10 = arith.constant 0.000000e+00 : f32
    %28 = vector.broadcast %cst_10 : f32 to vector<8x512xf32>
    %29 = arith.select %25, %27, %28 : vector<8x512xi1>, vector<8x512xf32>
    %c1_i32_11 = arith.constant 1 : i32
    %30 = vector.broadcast %c1_i32_11 : i32 to vector<8x512xi32>
    %31 = arith.addi %6, %30 : vector<8x512xi32>
    %32 = arith.cmpi eq, %24, %31 : vector<8x512xi32>
    %cst_12 = arith.constant 0.000000e+00 : f32
    %33 = vector.broadcast %cst_12 : f32 to vector<8x512xf32>
    %34 = arith.select %32, %7, %33 : vector<8x512xi1>, vector<8x512xf32>
    %35 = arith.addf %29, %34 : vector<8x512xf32>
    %c1 = arith.constant 1 : index
    %c0_13 = arith.constant 0 : index
    %c0_14 = arith.constant 0 : index
    %36 = vector.load %arg2[%c1, %c0_13, %c0_14] : memref<3x8x512xf32, #tpu.memory_space<vmem>>, vector<1x8x512xf32>
    %37 = vector.shape_cast %36 : vector<1x8x512xf32> to vector<8x512xf32>
    %c0_15 = arith.constant 0 : index
    %c1_16 = arith.constant 1 : index
    %c0_17 = arith.constant 0 : index
    %c0_18 = arith.constant 0 : index
    %38 = vector.load %arg3[%c0_15, %c1_16, %c0_17, %c0_18] : memref<1x3x8x512xf32, #tpu.memory_space<vmem>>, vector<1x1x8x512xf32>
    %39 = vector.shape_cast %38 : vector<1x1x8x512xf32> to vector<8x512xf32>
    %40 = arith.addf %37, %39 : vector<8x512xf32>
    %41 = math.floor %40 : vector<8x512xf32>
    %42 = arith.fptosi %41 : vector<8x512xf32> to vector<8x512xi32>
    %43 = arith.subf %40, %41 : vector<8x512xf32>
    %c0_i32_19 = arith.constant 0 : i32
    %c14_i32_20 = arith.constant 14 : i32
    %44 = vector.broadcast %c0_i32_19 : i32 to vector<8x512xi32>
    %45 = arith.maxsi %44, %42 : vector<8x512xi32>
    %46 = vector.broadcast %c14_i32_20 : i32 to vector<8x512xi32>
    %47 = arith.minsi %46, %45 : vector<8x512xi32>
    %48 = arith.cmpi eq, %47, %42 : vector<8x512xi32>
    %cst_21 = arith.constant 1.000000e+00 : f32
    %49 = vector.broadcast %cst_21 : f32 to vector<8x512xf32>
    %50 = arith.subf %49, %43 : vector<8x512xf32>
    %cst_22 = arith.constant 0.000000e+00 : f32
    %51 = vector.broadcast %cst_22 : f32 to vector<8x512xf32>
    %52 = arith.select %48, %50, %51 : vector<8x512xi1>, vector<8x512xf32>
    %c1_i32_23 = arith.constant 1 : i32
    %53 = vector.broadcast %c1_i32_23 : i32 to vector<8x512xi32>
    %54 = arith.addi %42, %53 : vector<8x512xi32>
    %55 = arith.cmpi eq, %47, %54 : vector<8x512xi32>
    %cst_24 = arith.constant 0.000000e+00 : f32
    %56 = vector.broadcast %cst_24 : f32 to vector<8x512xf32>
    %57 = arith.select %55, %43, %56 : vector<8x512xi1>, vector<8x512xf32>
    %58 = arith.addf %52, %57 : vector<8x512xf32>
    %c1_i32_25 = arith.constant 1 : i32
    %59 = vector.broadcast %c1_i32_25 : i32 to vector<8x512xi32>
    %60 = arith.addi %47, %59 : vector<8x512xi32>
    %61 = arith.cmpi eq, %60, %42 : vector<8x512xi32>
    %cst_26 = arith.constant 1.000000e+00 : f32
    %62 = vector.broadcast %cst_26 : f32 to vector<8x512xf32>
    %63 = arith.subf %62, %43 : vector<8x512xf32>
    %cst_27 = arith.constant 0.000000e+00 : f32
    %64 = vector.broadcast %cst_27 : f32 to vector<8x512xf32>
    %65 = arith.select %61, %63, %64 : vector<8x512xi1>, vector<8x512xf32>
    %c1_i32_28 = arith.constant 1 : i32
    %66 = vector.broadcast %c1_i32_28 : i32 to vector<8x512xi32>
    %67 = arith.addi %42, %66 : vector<8x512xi32>
    %68 = arith.cmpi eq, %60, %67 : vector<8x512xi32>
    %cst_29 = arith.constant 0.000000e+00 : f32
    %69 = vector.broadcast %cst_29 : f32 to vector<8x512xf32>
    %70 = arith.select %68, %43, %69 : vector<8x512xi1>, vector<8x512xf32>
    %71 = arith.addf %65, %70 : vector<8x512xf32>
    %c2 = arith.constant 2 : index
    %c0_30 = arith.constant 0 : index
    %c0_31 = arith.constant 0 : index
    %72 = vector.load %arg2[%c2, %c0_30, %c0_31] : memref<3x8x512xf32, #tpu.memory_space<vmem>>, vector<1x8x512xf32>
    %73 = vector.shape_cast %72 : vector<1x8x512xf32> to vector<8x512xf32>
    %c0_32 = arith.constant 0 : index
    %c2_33 = arith.constant 2 : index
    %c0_34 = arith.constant 0 : index
    %c0_35 = arith.constant 0 : index
    %74 = vector.load %arg3[%c0_32, %c2_33, %c0_34, %c0_35] : memref<1x3x8x512xf32, #tpu.memory_space<vmem>>, vector<1x1x8x512xf32>
    %75 = vector.shape_cast %74 : vector<1x1x8x512xf32> to vector<8x512xf32>
    %76 = arith.addf %73, %75 : vector<8x512xf32>
    %77 = math.floor %76 : vector<8x512xf32>
    %78 = arith.fptosi %77 : vector<8x512xf32> to vector<8x512xi32>
    %79 = arith.subf %76, %77 : vector<8x512xf32>
    %c0_i32_36 = arith.constant 0 : i32
    %c14_i32_37 = arith.constant 14 : i32
    %80 = vector.broadcast %c0_i32_36 : i32 to vector<8x512xi32>
    %81 = arith.maxsi %80, %78 : vector<8x512xi32>
    %82 = vector.broadcast %c14_i32_37 : i32 to vector<8x512xi32>
    %83 = arith.minsi %82, %81 : vector<8x512xi32>
    %84 = arith.cmpi eq, %83, %78 : vector<8x512xi32>
    %cst_38 = arith.constant 1.000000e+00 : f32
    %85 = vector.broadcast %cst_38 : f32 to vector<8x512xf32>
    %86 = arith.subf %85, %79 : vector<8x512xf32>
    %cst_39 = arith.constant 0.000000e+00 : f32
    %87 = vector.broadcast %cst_39 : f32 to vector<8x512xf32>
    %88 = arith.select %84, %86, %87 : vector<8x512xi1>, vector<8x512xf32>
    %c1_i32_40 = arith.constant 1 : i32
    %89 = vector.broadcast %c1_i32_40 : i32 to vector<8x512xi32>
    %90 = arith.addi %78, %89 : vector<8x512xi32>
    %91 = arith.cmpi eq, %83, %90 : vector<8x512xi32>
    %cst_41 = arith.constant 0.000000e+00 : f32
    %92 = vector.broadcast %cst_41 : f32 to vector<8x512xf32>
    %93 = arith.select %91, %79, %92 : vector<8x512xi1>, vector<8x512xf32>
    %94 = arith.addf %88, %93 : vector<8x512xf32>
    %c1_i32_42 = arith.constant 1 : i32
    %95 = vector.broadcast %c1_i32_42 : i32 to vector<8x512xi32>
    %96 = arith.addi %83, %95 : vector<8x512xi32>
    %97 = arith.cmpi eq, %96, %78 : vector<8x512xi32>
    %cst_43 = arith.constant 1.000000e+00 : f32
    %98 = vector.broadcast %cst_43 : f32 to vector<8x512xf32>
    %99 = arith.subf %98, %79 : vector<8x512xf32>
    %cst_44 = arith.constant 0.000000e+00 : f32
    %100 = vector.broadcast %cst_44 : f32 to vector<8x512xf32>
    %101 = arith.select %97, %99, %100 : vector<8x512xi1>, vector<8x512xf32>
    %c1_i32_45 = arith.constant 1 : i32
    %102 = vector.broadcast %c1_i32_45 : i32 to vector<8x512xi32>
    %103 = arith.addi %78, %102 : vector<8x512xi32>
    %104 = arith.cmpi eq, %96, %103 : vector<8x512xi32>
    %cst_46 = arith.constant 0.000000e+00 : f32
    %105 = vector.broadcast %cst_46 : f32 to vector<8x512xf32>
    %106 = arith.select %104, %79, %105 : vector<8x512xi1>, vector<8x512xf32>
    %107 = arith.addf %101, %106 : vector<8x512xf32>
    %c16_i32 = arith.constant 16 : i32
    %108 = vector.broadcast %c16_i32 : i32 to vector<8x512xi32>
    %109 = arith.muli %11, %108 : vector<8x512xi32>
    %110 = arith.addi %109, %47 : vector<8x512xi32>
    %c16_i32_47 = arith.constant 16 : i32
    %111 = vector.broadcast %c16_i32_47 : i32 to vector<8x512xi32>
    %112 = arith.muli %110, %111 : vector<8x512xi32>
    %113 = arith.addi %112, %83 : vector<8x512xi32>
    %c0_48 = arith.constant 0 : index
    %c0_49 = arith.constant 0 : index
    %c0_50 = arith.constant 0 : index
    %114 = vector.load %arg4[%c0_48, %c0_49, %c0_50] : memref<1x8x512xi32, #tpu.memory_space<vmem>>, vector<1x8x512xi32>
    %115 = vector.shape_cast %114 : vector<1x8x512xi32> to vector<8x512xi32>
    %116 = vector.shape_cast %113 : vector<8x512xi32> to vector<1x8x512xi32>
    tpu.vector_store %arg4[%c0_48, %c0_49, %c0_50], %116 {strides = array<i32>} : memref<1x8x512xi32, #tpu.memory_space<vmem>>, vector<1x8x512xi32>,
    %c0_51 = arith.constant 0 : index
    %c0_52 = arith.constant 0 : index
    %c0_53 = arith.constant 0 : index
    %c0_54 = arith.constant 0 : index
    %117 = vector.load %arg5[%c0_51, %c0_52, %c0_53, %c0_54] : memref<1x6x8x512xf32, #tpu.memory_space<vmem>>, vector<1x1x8x512xf32>
    %118 = vector.shape_cast %117 : vector<1x1x8x512xf32> to vector<8x512xf32>
    %119 = vector.shape_cast %22 : vector<8x512xf32> to vector<1x1x8x512xf32>
    tpu.vector_store %arg5[%c0_51, %c0_52, %c0_53, %c0_54], %119 {strides = array<i32>} : memref<1x6x8x512xf32, #tpu.memory_space<vmem>>, vector<1x1x8x512xf32>,
    %c0_55 = arith.constant 0 : index
    %c1_56 = arith.constant 1 : index
    %c0_57 = arith.constant 0 : index
    %c0_58 = arith.constant 0 : index
    %120 = vector.load %arg5[%c0_55, %c1_56, %c0_57, %c0_58] : memref<1x6x8x512xf32, #tpu.memory_space<vmem>>, vector<1x1x8x512xf32>
    %121 = vector.shape_cast %120 : vector<1x1x8x512xf32> to vector<8x512xf32>
    %122 = vector.shape_cast %35 : vector<8x512xf32> to vector<1x1x8x512xf32>
    tpu.vector_store %arg5[%c0_55, %c1_56, %c0_57, %c0_58], %122 {strides = array<i32>} : memref<1x6x8x512xf32, #tpu.memory_space<vmem>>, vector<1x1x8x512xf32>,
    %c0_59 = arith.constant 0 : index
    %c2_60 = arith.constant 2 : index
    %c0_61 = arith.constant 0 : index
    %c0_62 = arith.constant 0 : index
    %123 = vector.load %arg5[%c0_59, %c2_60, %c0_61, %c0_62] : memref<1x6x8x512xf32, #tpu.memory_space<vmem>>, vector<1x1x8x512xf32>
    %124 = vector.shape_cast %123 : vector<1x1x8x512xf32> to vector<8x512xf32>
    %125 = vector.shape_cast %58 : vector<8x512xf32> to vector<1x1x8x512xf32>
    tpu.vector_store %arg5[%c0_59, %c2_60, %c0_61, %c0_62], %125 {strides = array<i32>} : memref<1x6x8x512xf32, #tpu.memory_space<vmem>>, vector<1x1x8x512xf32>,
    %c0_63 = arith.constant 0 : index
    %c3 = arith.constant 3 : index
    %c0_64 = arith.constant 0 : index
    %c0_65 = arith.constant 0 : index
    %126 = vector.load %arg5[%c0_63, %c3, %c0_64, %c0_65] : memref<1x6x8x512xf32, #tpu.memory_space<vmem>>, vector<1x1x8x512xf32>
    %127 = vector.shape_cast %126 : vector<1x1x8x512xf32> to vector<8x512xf32>
    %128 = vector.shape_cast %71 : vector<8x512xf32> to vector<1x1x8x512xf32>
    tpu.vector_store %arg5[%c0_63, %c3, %c0_64, %c0_65], %128 {strides = array<i32>} : memref<1x6x8x512xf32, #tpu.memory_space<vmem>>, vector<1x1x8x512xf32>,
    %c0_66 = arith.constant 0 : index
    %c4 = arith.constant 4 : index
    %c0_67 = arith.constant 0 : index
    %c0_68 = arith.constant 0 : index
    %129 = vector.load %arg5[%c0_66, %c4, %c0_67, %c0_68] : memref<1x6x8x512xf32, #tpu.memory_space<vmem>>, vector<1x1x8x512xf32>
    %130 = vector.shape_cast %129 : vector<1x1x8x512xf32> to vector<8x512xf32>
    %131 = vector.shape_cast %94 : vector<8x512xf32> to vector<1x1x8x512xf32>
    tpu.vector_store %arg5[%c0_66, %c4, %c0_67, %c0_68], %131 {strides = array<i32>} : memref<1x6x8x512xf32, #tpu.memory_space<vmem>>, vector<1x1x8x512xf32>,
    %c0_69 = arith.constant 0 : index
    %c5 = arith.constant 5 : index
    %c0_70 = arith.constant 0 : index
    %c0_71 = arith.constant 0 : index
    %132 = vector.load %arg5[%c0_69, %c5, %c0_70, %c0_71] : memref<1x6x8x512xf32, #tpu.memory_space<vmem>>, vector<1x1x8x512xf32>
    %133 = vector.shape_cast %132 : vector<1x1x8x512xf32> to vector<8x512xf32>
    %134 = vector.shape_cast %107 : vector<8x512xf32> to vector<1x1x8x512xf32>
    tpu.vector_store %arg5[%c0_69, %c5, %c0_70, %c0_71], %134 {strides = array<i32>} : memref<1x6x8x512xf32, #tpu.memory_space<vmem>>, vector<1x1x8x512xf32>,
    return
  }
  func.func @transform_0(%arg0: i32, %arg1: i32) -> (i32, i32, i32) {
    %c0_i32 = arith.constant 0 : i32
    %c0_i32_0 = arith.constant 0 : i32
    %c0_i32_1 = arith.constant 0 : i32
    return %c0_i32, %arg1, %c0_i32_0 : i32, i32, i32
  }
  func.func @transform_1(%arg0: i32, %arg1: i32) -> (i32, i32, i32, i32) {
    %c0_i32 = arith.constant 0 : i32
    %c0_i32_0 = arith.constant 0 : i32
    %c0_i32_1 = arith.constant 0 : i32
    return %arg0, %c0_i32, %arg1, %c0_i32_0 : i32, i32, i32, i32
  }
  func.func @transform_2(%arg0: i32, %arg1: i32) -> (i32, i32, i32) {
    %c0_i32 = arith.constant 0 : i32
    %c0_i32_0 = arith.constant 0 : i32
    return %arg0, %arg1, %c0_i32 : i32, i32, i32
  }
  func.func @transform_3(%arg0: i32, %arg1: i32) -> (i32, i32, i32, i32) {
    %c0_i32 = arith.constant 0 : i32
    %c0_i32_0 = arith.constant 0 : i32
    %c0_i32_1 = arith.constant 0 : i32
    return %arg0, %c0_i32, %arg1, %c0_i32_0 : i32, i32, i32, i32
  }
}

module attributes {stable_mosaic.version = 11 : i64} {
  func.func @_combine_kernel(%arg0: i32, %arg1: i32, %arg2: memref<1x6x8x512xf32, #tpu.memory_space<vmem>>, %arg3: memref<1x2x8x8x512xf32, #tpu.memory_space<vmem>>, %arg4: memref<1x2x8x512xf32, #tpu.memory_space<vmem>>) attributes {dimension_semantics = [#tpu.dimension_semantics<parallel>, #tpu.dimension_semantics<parallel>], iteration_bounds = array<i64: 2, 1>, scalar_prefetch = 0 : i64, scratch_operands = 0 : i64, tpu.core_type = #tpu.core_type<tc>, window_params = [{transform_indices = @transform_0, window_bounds = array<i64: 1, 6, 8, 512>}, {transform_indices = @transform_1, window_bounds = array<i64: 1, 2, 8, 8, 512>}, {transform_indices = @transform_2, window_bounds = array<i64: 1, 2, 8, 512>}]} {
    %c0 = arith.constant 0 : index
    %c0_0 = arith.constant 0 : index
    %c0_1 = arith.constant 0 : index
    %c0_2 = arith.constant 0 : index
    %0 = vector.load %arg2[%c0, %c0_0, %c0_1, %c0_2] : memref<1x6x8x512xf32, #tpu.memory_space<vmem>>, vector<1x1x8x512xf32>
    %1 = vector.shape_cast %0 : vector<1x1x8x512xf32> to vector<8x512xf32>
    %c0_3 = arith.constant 0 : index
    %c2 = arith.constant 2 : index
    %c0_4 = arith.constant 0 : index
    %c0_5 = arith.constant 0 : index
    %2 = vector.load %arg2[%c0_3, %c2, %c0_4, %c0_5] : memref<1x6x8x512xf32, #tpu.memory_space<vmem>>, vector<1x1x8x512xf32>
    %3 = vector.shape_cast %2 : vector<1x1x8x512xf32> to vector<8x512xf32>
    %4 = arith.mulf %1, %3 : vector<8x512xf32>
    %c0_6 = arith.constant 0 : index
    %c4 = arith.constant 4 : index
    %c0_7 = arith.constant 0 : index
    %c0_8 = arith.constant 0 : index
    %5 = vector.load %arg2[%c0_6, %c4, %c0_7, %c0_8] : memref<1x6x8x512xf32, #tpu.memory_space<vmem>>, vector<1x1x8x512xf32>
    %6 = vector.shape_cast %5 : vector<1x1x8x512xf32> to vector<8x512xf32>
    %7 = arith.mulf %4, %6 : vector<8x512xf32>
    %c0_9 = arith.constant 0 : index
    %c0_10 = arith.constant 0 : index
    %c0_11 = arith.constant 0 : index
    %c0_12 = arith.constant 0 : index
    %c0_13 = arith.constant 0 : index
    %8 = vector.load %arg3[%c0_9, %c0_10, %c0_11, %c0_12, %c0_13] : memref<1x2x8x8x512xf32, #tpu.memory_space<vmem>>, vector<1x1x1x8x512xf32>
    %9 = vector.shape_cast %8 : vector<1x1x1x8x512xf32> to vector<8x512xf32>
    %10 = arith.mulf %7, %9 : vector<8x512xf32>
    %c0_14 = arith.constant 0 : index
    %c1 = arith.constant 1 : index
    %c0_15 = arith.constant 0 : index
    %c0_16 = arith.constant 0 : index
    %c0_17 = arith.constant 0 : index
    %11 = vector.load %arg3[%c0_14, %c1, %c0_15, %c0_16, %c0_17] : memref<1x2x8x8x512xf32, #tpu.memory_space<vmem>>, vector<1x1x1x8x512xf32>
    %12 = vector.shape_cast %11 : vector<1x1x1x8x512xf32> to vector<8x512xf32>
    %13 = arith.mulf %7, %12 : vector<8x512xf32>
    %c0_18 = arith.constant 0 : index
    %c5 = arith.constant 5 : index
    %c0_19 = arith.constant 0 : index
    %c0_20 = arith.constant 0 : index
    %14 = vector.load %arg2[%c0_18, %c5, %c0_19, %c0_20] : memref<1x6x8x512xf32, #tpu.memory_space<vmem>>, vector<1x1x8x512xf32>
    %15 = vector.shape_cast %14 : vector<1x1x8x512xf32> to vector<8x512xf32>
    %16 = arith.mulf %4, %15 : vector<8x512xf32>
    %c0_21 = arith.constant 0 : index
    %c0_22 = arith.constant 0 : index
    %c1_23 = arith.constant 1 : index
    %c0_24 = arith.constant 0 : index
    %c0_25 = arith.constant 0 : index
    %17 = vector.load %arg3[%c0_21, %c0_22, %c1_23, %c0_24, %c0_25] : memref<1x2x8x8x512xf32, #tpu.memory_space<vmem>>, vector<1x1x1x8x512xf32>
    %18 = vector.shape_cast %17 : vector<1x1x1x8x512xf32> to vector<8x512xf32>
    %19 = arith.mulf %16, %18 : vector<8x512xf32>
    %20 = arith.addf %10, %19 : vector<8x512xf32>
    %c0_26 = arith.constant 0 : index
    %c1_27 = arith.constant 1 : index
    %c1_28 = arith.constant 1 : index
    %c0_29 = arith.constant 0 : index
    %c0_30 = arith.constant 0 : index
    %21 = vector.load %arg3[%c0_26, %c1_27, %c1_28, %c0_29, %c0_30] : memref<1x2x8x8x512xf32, #tpu.memory_space<vmem>>, vector<1x1x1x8x512xf32>
    %22 = vector.shape_cast %21 : vector<1x1x1x8x512xf32> to vector<8x512xf32>
    %23 = arith.mulf %16, %22 : vector<8x512xf32>
    %24 = arith.addf %13, %23 : vector<8x512xf32>
    %c0_31 = arith.constant 0 : index
    %c3 = arith.constant 3 : index
    %c0_32 = arith.constant 0 : index
    %c0_33 = arith.constant 0 : index
    %25 = vector.load %arg2[%c0_31, %c3, %c0_32, %c0_33] : memref<1x6x8x512xf32, #tpu.memory_space<vmem>>, vector<1x1x8x512xf32>
    %26 = vector.shape_cast %25 : vector<1x1x8x512xf32> to vector<8x512xf32>
    %27 = arith.mulf %1, %26 : vector<8x512xf32>
    %c0_34 = arith.constant 0 : index
    %c4_35 = arith.constant 4 : index
    %c0_36 = arith.constant 0 : index
    %c0_37 = arith.constant 0 : index
    %28 = vector.load %arg2[%c0_34, %c4_35, %c0_36, %c0_37] : memref<1x6x8x512xf32, #tpu.memory_space<vmem>>, vector<1x1x8x512xf32>
    %29 = vector.shape_cast %28 : vector<1x1x8x512xf32> to vector<8x512xf32>
    %30 = arith.mulf %27, %29 : vector<8x512xf32>
    %c0_38 = arith.constant 0 : index
    %c0_39 = arith.constant 0 : index
    %c2_40 = arith.constant 2 : index
    %c0_41 = arith.constant 0 : index
    %c0_42 = arith.constant 0 : index
    %31 = vector.load %arg3[%c0_38, %c0_39, %c2_40, %c0_41, %c0_42] : memref<1x2x8x8x512xf32, #tpu.memory_space<vmem>>, vector<1x1x1x8x512xf32>
    %32 = vector.shape_cast %31 : vector<1x1x1x8x512xf32> to vector<8x512xf32>
    %33 = arith.mulf %30, %32 : vector<8x512xf32>
    %34 = arith.addf %20, %33 : vector<8x512xf32>
    %c0_43 = arith.constant 0 : index
    %c1_44 = arith.constant 1 : index
    %c2_45 = arith.constant 2 : index
    %c0_46 = arith.constant 0 : index
    %c0_47 = arith.constant 0 : index
    %35 = vector.load %arg3[%c0_43, %c1_44, %c2_45, %c0_46, %c0_47] : memref<1x2x8x8x512xf32, #tpu.memory_space<vmem>>, vector<1x1x1x8x512xf32>
    %36 = vector.shape_cast %35 : vector<1x1x1x8x512xf32> to vector<8x512xf32>
    %37 = arith.mulf %30, %36 : vector<8x512xf32>
    %38 = arith.addf %24, %37 : vector<8x512xf32>
    %c0_48 = arith.constant 0 : index
    %c5_49 = arith.constant 5 : index
    %c0_50 = arith.constant 0 : index
    %c0_51 = arith.constant 0 : index
    %39 = vector.load %arg2[%c0_48, %c5_49, %c0_50, %c0_51] : memref<1x6x8x512xf32, #tpu.memory_space<vmem>>, vector<1x1x8x512xf32>
    %40 = vector.shape_cast %39 : vector<1x1x8x512xf32> to vector<8x512xf32>
    %41 = arith.mulf %27, %40 : vector<8x512xf32>
    %c0_52 = arith.constant 0 : index
    %c0_53 = arith.constant 0 : index
    %c3_54 = arith.constant 3 : index
    %c0_55 = arith.constant 0 : index
    %c0_56 = arith.constant 0 : index
    %42 = vector.load %arg3[%c0_52, %c0_53, %c3_54, %c0_55, %c0_56] : memref<1x2x8x8x512xf32, #tpu.memory_space<vmem>>, vector<1x1x1x8x512xf32>
    %43 = vector.shape_cast %42 : vector<1x1x1x8x512xf32> to vector<8x512xf32>
    %44 = arith.mulf %41, %43 : vector<8x512xf32>
    %45 = arith.addf %34, %44 : vector<8x512xf32>
    %c0_57 = arith.constant 0 : index
    %c1_58 = arith.constant 1 : index
    %c3_59 = arith.constant 3 : index
    %c0_60 = arith.constant 0 : index
    %c0_61 = arith.constant 0 : index
    %46 = vector.load %arg3[%c0_57, %c1_58, %c3_59, %c0_60, %c0_61] : memref<1x2x8x8x512xf32, #tpu.memory_space<vmem>>, vector<1x1x1x8x512xf32>
    %47 = vector.shape_cast %46 : vector<1x1x1x8x512xf32> to vector<8x512xf32>
    %48 = arith.mulf %41, %47 : vector<8x512xf32>
    %49 = arith.addf %38, %48 : vector<8x512xf32>
    %c0_62 = arith.constant 0 : index
    %c1_63 = arith.constant 1 : index
    %c0_64 = arith.constant 0 : index
    %c0_65 = arith.constant 0 : index
    %50 = vector.load %arg2[%c0_62, %c1_63, %c0_64, %c0_65] : memref<1x6x8x512xf32, #tpu.memory_space<vmem>>, vector<1x1x8x512xf32>
    %51 = vector.shape_cast %50 : vector<1x1x8x512xf32> to vector<8x512xf32>
    %c0_66 = arith.constant 0 : index
    %c2_67 = arith.constant 2 : index
    %c0_68 = arith.constant 0 : index
    %c0_69 = arith.constant 0 : index
    %52 = vector.load %arg2[%c0_66, %c2_67, %c0_68, %c0_69] : memref<1x6x8x512xf32, #tpu.memory_space<vmem>>, vector<1x1x8x512xf32>
    %53 = vector.shape_cast %52 : vector<1x1x8x512xf32> to vector<8x512xf32>
    %54 = arith.mulf %51, %53 : vector<8x512xf32>
    %c0_70 = arith.constant 0 : index
    %c4_71 = arith.constant 4 : index
    %c0_72 = arith.constant 0 : index
    %c0_73 = arith.constant 0 : index
    %55 = vector.load %arg2[%c0_70, %c4_71, %c0_72, %c0_73] : memref<1x6x8x512xf32, #tpu.memory_space<vmem>>, vector<1x1x8x512xf32>
    %56 = vector.shape_cast %55 : vector<1x1x8x512xf32> to vector<8x512xf32>
    %57 = arith.mulf %54, %56 : vector<8x512xf32>
    %c0_74 = arith.constant 0 : index
    %c0_75 = arith.constant 0 : index
    %c4_76 = arith.constant 4 : index
    %c0_77 = arith.constant 0 : index
    %c0_78 = arith.constant 0 : index
    %58 = vector.load %arg3[%c0_74, %c0_75, %c4_76, %c0_77, %c0_78] : memref<1x2x8x8x512xf32, #tpu.memory_space<vmem>>, vector<1x1x1x8x512xf32>
    %59 = vector.shape_cast %58 : vector<1x1x1x8x512xf32> to vector<8x512xf32>
    %60 = arith.mulf %57, %59 : vector<8x512xf32>
    %61 = arith.addf %45, %60 : vector<8x512xf32>
    %c0_79 = arith.constant 0 : index
    %c1_80 = arith.constant 1 : index
    %c4_81 = arith.constant 4 : index
    %c0_82 = arith.constant 0 : index
    %c0_83 = arith.constant 0 : index
    %62 = vector.load %arg3[%c0_79, %c1_80, %c4_81, %c0_82, %c0_83] : memref<1x2x8x8x512xf32, #tpu.memory_space<vmem>>, vector<1x1x1x8x512xf32>
    %63 = vector.shape_cast %62 : vector<1x1x1x8x512xf32> to vector<8x512xf32>
    %64 = arith.mulf %57, %63 : vector<8x512xf32>
    %65 = arith.addf %49, %64 : vector<8x512xf32>
    %c0_84 = arith.constant 0 : index
    %c5_85 = arith.constant 5 : index
    %c0_86 = arith.constant 0 : index
    %c0_87 = arith.constant 0 : index
    %66 = vector.load %arg2[%c0_84, %c5_85, %c0_86, %c0_87] : memref<1x6x8x512xf32, #tpu.memory_space<vmem>>, vector<1x1x8x512xf32>
    %67 = vector.shape_cast %66 : vector<1x1x8x512xf32> to vector<8x512xf32>
    %68 = arith.mulf %54, %67 : vector<8x512xf32>
    %c0_88 = arith.constant 0 : index
    %c0_89 = arith.constant 0 : index
    %c5_90 = arith.constant 5 : index
    %c0_91 = arith.constant 0 : index
    %c0_92 = arith.constant 0 : index
    %69 = vector.load %arg3[%c0_88, %c0_89, %c5_90, %c0_91, %c0_92] : memref<1x2x8x8x512xf32, #tpu.memory_space<vmem>>, vector<1x1x1x8x512xf32>
    %70 = vector.shape_cast %69 : vector<1x1x1x8x512xf32> to vector<8x512xf32>
    %71 = arith.mulf %68, %70 : vector<8x512xf32>
    %72 = arith.addf %61, %71 : vector<8x512xf32>
    %c0_93 = arith.constant 0 : index
    %c1_94 = arith.constant 1 : index
    %c5_95 = arith.constant 5 : index
    %c0_96 = arith.constant 0 : index
    %c0_97 = arith.constant 0 : index
    %73 = vector.load %arg3[%c0_93, %c1_94, %c5_95, %c0_96, %c0_97] : memref<1x2x8x8x512xf32, #tpu.memory_space<vmem>>, vector<1x1x1x8x512xf32>
    %74 = vector.shape_cast %73 : vector<1x1x1x8x512xf32> to vector<8x512xf32>
    %75 = arith.mulf %68, %74 : vector<8x512xf32>
    %76 = arith.addf %65, %75 : vector<8x512xf32>
    %c0_98 = arith.constant 0 : index
    %c3_99 = arith.constant 3 : index
    %c0_100 = arith.constant 0 : index
    %c0_101 = arith.constant 0 : index
    %77 = vector.load %arg2[%c0_98, %c3_99, %c0_100, %c0_101] : memref<1x6x8x512xf32, #tpu.memory_space<vmem>>, vector<1x1x8x512xf32>
    %78 = vector.shape_cast %77 : vector<1x1x8x512xf32> to vector<8x512xf32>
    %79 = arith.mulf %51, %78 : vector<8x512xf32>
    %c0_102 = arith.constant 0 : index
    %c4_103 = arith.constant 4 : index
    %c0_104 = arith.constant 0 : index
    %c0_105 = arith.constant 0 : index
    %80 = vector.load %arg2[%c0_102, %c4_103, %c0_104, %c0_105] : memref<1x6x8x512xf32, #tpu.memory_space<vmem>>, vector<1x1x8x512xf32>
    %81 = vector.shape_cast %80 : vector<1x1x8x512xf32> to vector<8x512xf32>
    %82 = arith.mulf %79, %81 : vector<8x512xf32>
    %c0_106 = arith.constant 0 : index
    %c0_107 = arith.constant 0 : index
    %c6 = arith.constant 6 : index
    %c0_108 = arith.constant 0 : index
    %c0_109 = arith.constant 0 : index
    %83 = vector.load %arg3[%c0_106, %c0_107, %c6, %c0_108, %c0_109] : memref<1x2x8x8x512xf32, #tpu.memory_space<vmem>>, vector<1x1x1x8x512xf32>
    %84 = vector.shape_cast %83 : vector<1x1x1x8x512xf32> to vector<8x512xf32>
    %85 = arith.mulf %82, %84 : vector<8x512xf32>
    %86 = arith.addf %72, %85 : vector<8x512xf32>
    %c0_110 = arith.constant 0 : index
    %c1_111 = arith.constant 1 : index
    %c6_112 = arith.constant 6 : index
    %c0_113 = arith.constant 0 : index
    %c0_114 = arith.constant 0 : index
    %87 = vector.load %arg3[%c0_110, %c1_111, %c6_112, %c0_113, %c0_114] : memref<1x2x8x8x512xf32, #tpu.memory_space<vmem>>, vector<1x1x1x8x512xf32>
    %88 = vector.shape_cast %87 : vector<1x1x1x8x512xf32> to vector<8x512xf32>
    %89 = arith.mulf %82, %88 : vector<8x512xf32>
    %90 = arith.addf %76, %89 : vector<8x512xf32>
    %c0_115 = arith.constant 0 : index
    %c5_116 = arith.constant 5 : index
    %c0_117 = arith.constant 0 : index
    %c0_118 = arith.constant 0 : index
    %91 = vector.load %arg2[%c0_115, %c5_116, %c0_117, %c0_118] : memref<1x6x8x512xf32, #tpu.memory_space<vmem>>, vector<1x1x8x512xf32>
    %92 = vector.shape_cast %91 : vector<1x1x8x512xf32> to vector<8x512xf32>
    %93 = arith.mulf %79, %92 : vector<8x512xf32>
    %c0_119 = arith.constant 0 : index
    %c0_120 = arith.constant 0 : index
    %c7 = arith.constant 7 : index
    %c0_121 = arith.constant 0 : index
    %c0_122 = arith.constant 0 : index
    %94 = vector.load %arg3[%c0_119, %c0_120, %c7, %c0_121, %c0_122] : memref<1x2x8x8x512xf32, #tpu.memory_space<vmem>>, vector<1x1x1x8x512xf32>
    %95 = vector.shape_cast %94 : vector<1x1x1x8x512xf32> to vector<8x512xf32>
    %96 = arith.mulf %93, %95 : vector<8x512xf32>
    %97 = arith.addf %86, %96 : vector<8x512xf32>
    %c0_123 = arith.constant 0 : index
    %c1_124 = arith.constant 1 : index
    %c7_125 = arith.constant 7 : index
    %c0_126 = arith.constant 0 : index
    %c0_127 = arith.constant 0 : index
    %98 = vector.load %arg3[%c0_123, %c1_124, %c7_125, %c0_126, %c0_127] : memref<1x2x8x8x512xf32, #tpu.memory_space<vmem>>, vector<1x1x1x8x512xf32>
    %99 = vector.shape_cast %98 : vector<1x1x1x8x512xf32> to vector<8x512xf32>
    %100 = arith.mulf %93, %99 : vector<8x512xf32>
    %101 = arith.addf %90, %100 : vector<8x512xf32>
    %c0_128 = arith.constant 0 : index
    %c0_129 = arith.constant 0 : index
    %c0_130 = arith.constant 0 : index
    %c0_131 = arith.constant 0 : index
    %102 = vector.load %arg4[%c0_128, %c0_129, %c0_130, %c0_131] : memref<1x2x8x512xf32, #tpu.memory_space<vmem>>, vector<1x1x8x512xf32>
    %103 = vector.shape_cast %102 : vector<1x1x8x512xf32> to vector<8x512xf32>
    %104 = vector.shape_cast %97 : vector<8x512xf32> to vector<1x1x8x512xf32>
    tpu.vector_store %arg4[%c0_128, %c0_129, %c0_130, %c0_131], %104 {strides = array<i32>} : memref<1x2x8x512xf32, #tpu.memory_space<vmem>>, vector<1x1x8x512xf32>,
    %c0_132 = arith.constant 0 : index
    %c1_133 = arith.constant 1 : index
    %c0_134 = arith.constant 0 : index
    %c0_135 = arith.constant 0 : index
    %105 = vector.load %arg4[%c0_132, %c1_133, %c0_134, %c0_135] : memref<1x2x8x512xf32, #tpu.memory_space<vmem>>, vector<1x1x8x512xf32>
    %106 = vector.shape_cast %105 : vector<1x1x8x512xf32> to vector<8x512xf32>
    %107 = vector.shape_cast %101 : vector<8x512xf32> to vector<1x1x8x512xf32>
    tpu.vector_store %arg4[%c0_132, %c1_133, %c0_134, %c0_135], %107 {strides = array<i32>} : memref<1x2x8x512xf32, #tpu.memory_space<vmem>>, vector<1x1x8x512xf32>,
    return
  }
  func.func @transform_0(%arg0: i32, %arg1: i32) -> (i32, i32, i32, i32) {
    %c0_i32 = arith.constant 0 : i32
    %c0_i32_0 = arith.constant 0 : i32
    %c0_i32_1 = arith.constant 0 : i32
    return %arg0, %c0_i32, %arg1, %c0_i32_0 : i32, i32, i32, i32
  }
  func.func @transform_1(%arg0: i32, %arg1: i32) -> (i32, i32, i32, i32, i32) {
    %c0_i32 = arith.constant 0 : i32
    %c0_i32_0 = arith.constant 0 : i32
    %c0_i32_1 = arith.constant 0 : i32
    %c0_i32_2 = arith.constant 0 : i32
    return %arg0, %c0_i32, %c0_i32_0, %arg1, %c0_i32_1 : i32, i32, i32, i32, i32
  }
  func.func @transform_2(%arg0: i32, %arg1: i32) -> (i32, i32, i32, i32) {
    %c0_i32 = arith.constant 0 : i32
    %c0_i32_0 = arith.constant 0 : i32
    %c0_i32_1 = arith.constant 0 : i32
    return %arg0, %c0_i32, %arg1, %c0_i32_0 : i32, i32, i32, i32
  }
}

</mosaic_0001>

<llo_original>
// kernel: spatial_transformer.2
$region0: #{spatial_transformer.2}
  #allocation0 [shape = 'u32[]', space=smem, size = 0x4, offset = 0x4, fixed_abs, tag = 'smem constant byte address 0x4 - core index']
  #allocation1 [shape = 'u32[144,128]{1,0:T(1,128)}', space=vmem, size = 0x12000, scoped, tag = 'internal scratch']
  %s0 = inlined_call_operand.vmem [shape: f32[3,8,512], index: 0, kind: input, shape index: {}]
  %s1 = inlined_call_operand.vmem [shape: f32[2,3,8,512], index: 1, kind: input, shape index: {}]
  %s2 = inlined_call_operand.vmem [shape: s32[2,8,512], index: 2, kind: output, shape index: {0}]
  %s3 = inlined_call_operand.vmem [shape: f32[2,6,8,512], index: 3, kind: output, shape index: {1}]
  %4 = xla_tuple %s2, %s3
  %s5 = sld [smem:[#allocation0]]
  $region49: #{spatial_transformer.2} parent=0
    _
  %s7 = ssub.s32 1, %s5
  %s8 = scalar_select 0, %s7, %s5
  loop: start=0, step=1, limit=4
  $region2: #{spatial_transformer.2} parent=0 // loop_pre_header
    _
  $region3: #{spatial_transformer.2} parent=0 // loop_header
    %s10 = sphi 0, %s14
    %p11 = scmp.ge.s32.totalorder %s10, 4
    %s17 = sphi 0, %s29
    %s18 = sphi 0, %s25
    %s19 = sphi 0, %s17
    %s20 = sphi 0, %s18
    %s21 = sphi 0, %s19
    %s22 = sphi 0, %s20
    %s32 = sphi 0, %s34
    %s35 = sphi 0, %s32
    %s36 = sphi 0, %s35
    %s52 = sphi 0, %s36
    %s60 = sphi 0, %s62
    %s63 = sphi 0, %s60
    %s64 = sphi 0, %s63
    %s80 = sphi 0, %s64
    %s88 = sphi 0, %s90
    %s91 = sphi 0, %s88
    %s92 = sphi 0, %s91
    %s108 = sphi 0, %s92
    %s116 = sphi 0, %s118
    %s119 = sphi 0, %s116
    %s120 = sphi 0, %s119
    %s136 = sphi 0, %s120
  $region4: #{spatial_transformer.2} parent=0 // loop_header_branch
    %13 = sbr.rel (%p11) target = $region8
  $region5: #{spatial_transformer.2} parent=0 // loop_body
    %s15 = ssub.s32 %s10, 1
    %s16 = ssub.s32 %s10, 2
    %s23 = sadd.s32 1, %s18
    %p24 = scmp.ge.s32.totalorder %s23, 1
    %s25 = scalar_select %p24, 0, %s23
    %s26 = sadd.s32 1, %s17
    %s27 = scalar_select %p24, %s26, %s17
    %p28 = scmp.ge.s32.totalorder %s27, 2
    %s29 = scalar_select %p28, 0, %s27
    %s30 = ssub.s32 %s18, %s25
    %p31 = scmp.eq.s32.totalorder %s30, 0
    %s33 = sadd.s32 %s32, 1
    %s34 = scalar_select %p31, %s32, %s33
    %p37 = pneg %p31
    %p38 = scmp.eq.s32.totalorder %s10, 1
    %p39 = por %p37, %p38
    %p40 = scmp.ne.s32.totalorder %s32, %s35
    %p41 = scmp.eq.s32.totalorder %s10, 0
    %p42 = por %p40, %p41
    %p43 = scmp.ne.s32.totalorder %s32, %s35
    %p44 = scmp.eq.s32.totalorder %s15, 1
    %p45 = por %p43, %p44
    %p46 = scmp.ne.s32.totalorder %s35, %s36
    %p47 = scmp.eq.s32.totalorder %s15, 0
    %p48 = por %p46, %p47
    %p49 = scmp.ne.s32.totalorder %s35, %s36
    %p50 = scmp.eq.s32.totalorder %s16, 1
    %p51 = por %p49, %p50
    %p53 = scmp.ne.s32.totalorder %s36, %s52
    %p54 = scmp.eq.s32.totalorder %s16, 0
    %p55 = por %p53, %p54
    %s56 = ssub.s32 %s17, %s29
    %s57 = ssub.s32 %s18, %s25
    %s58 = sor.u32 %s56, %s57
    %p59 = scmp.eq.s32.totalorder %s58, 0
    %s61 = sadd.s32 %s60, 1
    %s62 = scalar_select %p59, %s60, %s61
    %p65 = pneg %p59
    %p66 = scmp.eq.s32.totalorder %s10, 1
    %p67 = por %p65, %p66
    %p68 = scmp.ne.s32.totalorder %s60, %s63
    %p69 = scmp.eq.s32.totalorder %s10, 0
    %p70 = por %p68, %p69
    %p71 = scmp.ne.s32.totalorder %s60, %s63
    %p72 = scmp.eq.s32.totalorder %s15, 1
    %p73 = por %p71, %p72
    %p74 = scmp.ne.s32.totalorder %s63, %s64
    %p75 = scmp.eq.s32.totalorder %s15, 0
    %p76 = por %p74, %p75
    %p77 = scmp.ne.s32.totalorder %s63, %s64
    %p78 = scmp.eq.s32.totalorder %s16, 1
    %p79 = por %p77, %p78
    %p81 = scmp.ne.s32.totalorder %s64, %s80
    %p82 = scmp.eq.s32.totalorder %s16, 0
    %p83 = por %p81, %p82
    %s84 = ssub.s32 %s17, %s29
    %s85 = ssub.s32 %s18, %s25
    %s86 = sor.u32 %s84, %s85
    %p87 = scmp.eq.s32.totalorder %s86, 0
    %s89 = sadd.s32 %s88, 1
    %s90 = scalar_select %p87, %s88, %s89
    %p93 = pneg %p87
    %p94 = scmp.eq.s32.totalorder %s10, 1
    %p95 = por %p93, %p94
    %p96 = scmp.ne.s32.totalorder %s88, %s91
    %p97 = scmp.eq.s32.totalorder %s10, 0
    %p98 = por %p96, %p97
    %p99 = scmp.ne.s32.totalorder %s88, %s91
    %p100 = scmp.eq.s32.totalorder %s15, 1
    %p101 = por %p99, %p100
    %p102 = scmp.ne.s32.totalorder %s91, %s92
    %p103 = scmp.eq.s32.totalorder %s15, 0
    %p104 = por %p102, %p103
    %p105 = scmp.ne.s32.totalorder %s91, %s92
    %p106 = scmp.eq.s32.totalorder %s16, 1
    %p107 = por %p105, %p106
    %p109 = scmp.ne.s32.totalorder %s92, %s108
    %p110 = scmp.eq.s32.totalorder %s16, 0
    %p111 = por %p109, %p110
    %s112 = ssub.s32 %s17, %s29
    %s113 = ssub.s32 %s18, %s25
    %s114 = sor.u32 %s112, %s113
    %p115 = scmp.eq.s32.totalorder %s114, 0
    %s117 = sadd.s32 %s116, 1
    %s118 = scalar_select %p115, %s116, %s117
    %p121 = pneg %p115
    %p122 = scmp.eq.s32.totalorder %s10, 1
    %p123 = por %p121, %p122
    %p124 = scmp.ne.s32.totalorder %s116, %s119
    %p125 = scmp.eq.s32.totalorder %s10, 0
    %p126 = por %p124, %p125
    %p127 = scmp.ne.s32.totalorder %s116, %s119
    %p128 = scmp.eq.s32.totalorder %s15, 1
    %p129 = por %p127, %p128
    %p130 = scmp.ne.s32.totalorder %s119, %s120
    %p131 = scmp.eq.s32.totalorder %s15, 0
    %p132 = por %p130, %p131
    %p133 = scmp.ne.s32.totalorder %s119, %s120
    %p134 = scmp.eq.s32.totalorder %s16, 1
    %p135 = por %p133, %p134
    %p137 = scmp.ne.s32.totalorder %s120, %s136
    %p138 = scmp.eq.s32.totalorder %s16, 0
    %p139 = por %p137, %p138
    %p140 = scmp.le.s32.totalorder 1, %s10
    %p141 = scmp.lt.s32.totalorder %s10, 3
    %p142 = pnand %p140, %p141
    %p143 = pneg %p142
    // Predicated region
    $region9: #{spatial_transformer.2} parent=5 // pred_check
      _
    $region10: #{spatial_transformer.2} parent=5 // pred_check_branch
      %145 = sbr.rel (%p142) target = $region12
    $region11: #{spatial_transformer.2} parent=5 // pred_region
      %s146 = ssub.s32 %s10, 1
      // Predicated region
      $region13: #{spatial_transformer.2} parent=11 // pred_check
        %p147 = pneg %p48
      $region14: #{spatial_transformer.2} parent=11 // pred_check_branch
        %149 = sbr.rel (%p147) target = $region16
      $region15: #{spatial_transformer.2} parent=11 // pred_region
        %p150 = scmp.lt.s32.totalorder %s20, 0
        %s151 = scalar_select %p150, %s20, 0
        %s152 = smul.addr %s151, 4
        %s153 = smul.addr %s152, 8
        %s154 = scalar_lea.vmem %s0, %s153
      $region16: #{spatial_transformer.2} parent=11 // pred_fallthru
        _
    $region12: #{spatial_transformer.2} parent=5 // pred_fallthru
      _
    %p155 = scmp.lt.s32.totalorder %s10, 2
    // Predicated region
    $region17: #{spatial_transformer.2} parent=5 // pred_check
      %p156 = pneg %p155
    $region18: #{spatial_transformer.2} parent=5 // pred_check_branch
      %158 = sbr.rel (%p156) target = $region20
    $region19: #{spatial_transformer.2} parent=5 // pred_region
      // Predicated region
      $region21: #{spatial_transformer.2} parent=19 // pred_check
        %p159 = pneg %p70
      $region22: #{spatial_transformer.2} parent=19 // pred_check_branch
        %161 = sbr.rel (%p159) target = $region24
      $region23: #{spatial_transformer.2} parent=19 // pred_region
        %p162 = scmp.lt.s32.totalorder %s17, 1
        %s163 = scalar_select %p162, %s17, 1
        %p164 = scmp.lt.s32.totalorder %s18, 0
        %s165 = scalar_select %p164, %s18, 0
        %s166 = smul.addr %s165, 4
        %s167 = smul.addr %s163, 12
        %s168 = sadd.s32 %s166, %s167
        %s169 = smul.addr %s168, 8
        %s170 = scalar_lea.vmem %s1, %s169
      $region24: #{spatial_transformer.2} parent=19 // pred_fallthru
        _
    $region20: #{spatial_transformer.2} parent=5 // pred_fallthru
      _
    %p171 = scmp.le.s32.totalorder 1, %s10
    %p172 = scmp.lt.s32.totalorder %s10, 3
    %p173 = pnand %p171, %p172
    %p174 = pneg %p173
    // Predicated region
    $region25: #{spatial_transformer.2} parent=5 // pred_check
      _
    $region26: #{spatial_transformer.2} parent=5 // pred_check_branch
      %176 = sbr.rel (%p173) target = $region28
    $region27: #{spatial_transformer.2} parent=5 // pred_region
      %s177 = ssub.s32 %s10, 1
      %p178 = scmp.lt.s32.totalorder %s20, 0
      %s179 = scalar_select %p178, %s20, 0
      %s180 = smul.addr %s179, 4
      %s181 = smul.addr %s180, 8
      %s182 = scalar_lea.vmem %s0, %s181
      %p183 = pneg %p48
      %p184 = pneg %p45
      %p185 = scmp.lt.s32.totalorder %s19, 1
      %s186 = scalar_select %p185, %s19, 1
      %p187 = scmp.lt.s32.totalorder %s20, 0
      %s188 = scalar_select %p187, %s20, 0
      %s189 = smul.addr %s188, 4
      %s190 = smul.addr %s186, 12
      %s191 = sadd.s32 %s189, %s190
      %s192 = smul.addr %s191, 8
      %s193 = scalar_lea.vmem %s1, %s192
      %p194 = pneg %p76
      %p195 = pneg %p73
      %p196 = pneg %p104
      %p197 = pneg %p101
      %p198 = scmp.lt.s32.totalorder %s19, 1
      %s199 = scalar_select %p198, %s19, 1
      %p200 = scmp.lt.s32.totalorder %s20, 0
      %s201 = scalar_select %p200, %s20, 0
      %s202 = smul.addr %s201, 4
      %s203 = smul.addr %s199, 4
      %s204 = sadd.s32 %s202, %s203
      %s205 = smul.addr %s204, 8
      %s206 = scalar_lea.vmem %s2, %s205
      %p207 = pneg %p132
      %p208 = pneg %p129
      %p209 = scmp.lt.s32.totalorder %s19, 1
      %s210 = scalar_select %p209, %s19, 1
      %p211 = scmp.lt.s32.totalorder %s20, 0
      %s212 = scalar_select %p211, %s20, 0
      %s213 = smul.addr %s212, 4
      %s214 = smul.addr %s210, 24
      %s215 = sadd.s32 %s213, %s214
      %s216 = smul.addr %s215, 8
      %s217 = scalar_lea.vmem %s3, %s216
      %p218 = scmp.lt.s32.totalorder %s20, 0
      %s219 = scalar_select %p218, %s20, 0
      %s220 = smul.addr %s219, 4
      %s221 = smul.addr %s220, 8
      %s222 = scalar_lea.vmem %s0, %s221
      %p223 = scmp.lt.s32.totalorder %s19, 1
      %s224 = scalar_select %p223, %s19, 1
      %p225 = scmp.lt.s32.totalorder %s20, 0
      %s226 = scalar_select %p225, %s20, 0
      %s227 = smul.addr %s226, 4
      %s228 = smul.addr %s224, 12
      %s229 = sadd.s32 %s227, %s228
      %s230 = smul.addr %s229, 8
      %s231 = scalar_lea.vmem %s1, %s230
      %p232 = scmp.lt.s32.totalorder %s19, 1
      %s233 = scalar_select %p232, %s19, 1
      %p234 = scmp.lt.s32.totalorder %s20, 0
      %s235 = scalar_select %p234, %s20, 0
      %s236 = smul.addr %s235, 4
      %s237 = smul.addr %s233, 4
      %s238 = sadd.s32 %s236, %s237
      %s239 = smul.addr %s238, 8
      %s240 = scalar_lea.vmem %s2, %s239
      %p241 = scmp.lt.s32.totalorder %s19, 1
      %s242 = scalar_select %p241, %s19, 1
      %p243 = scmp.lt.s32.totalorder %s20, 0
      %s244 = scalar_select %p243, %s20, 0
      %s245 = smul.addr %s244, 4
      %s246 = smul.addr %s242, 24
      %s247 = sadd.s32 %s245, %s246
      %s248 = smul.addr %s247, 8
      %s249 = scalar_lea.vmem %s3, %s248
      %v250 = vld [vmem:[%s222] sm:$0xff]
      %v251 = vld [vmem:[%s222 + $0x8] sm:$0xff]
      %v252 = vld [vmem:[%s222 + $0x10] sm:$0xff]
      %v253 = vld [vmem:[%s222 + $0x18] sm:$0xff]
      %v254 = vld [vmem:[%s231] sm:$0xff]
      %v255 = vld [vmem:[%s231 + $0x8] sm:$0xff]
      %v256 = vld [vmem:[%s231 + $0x10] sm:$0xff]
      %v257 = vld [vmem:[%s231 + $0x18] sm:$0xff]
      %v258 = vadd.f32 %v250, %v254
      %v259 = vadd.f32 %v251, %v255
      %v260 = vadd.f32 %v252, %v256
      %v261 = vadd.f32 %v253, %v257
      %v262 = vfloor.f32 %v258
      %v263 = vfloor.f32 %v259
      %v264 = vfloor.f32 %v260
      %v265 = vfloor.f32 %v261
      %v266 = vcvt.f32.s32.to.zero.pseudo %v262
      %v267 = vcvt.f32.s32.to.zero.pseudo %v263
      %v268 = vcvt.f32.s32.to.zero.pseudo %v264
      %v269 = vcvt.f32.s32.to.zero.pseudo %v265
      %v270 = vsub.f32 %v258, %v262
      %v271 = vsub.f32 %v259, %v263
      %v272 = vsub.f32 %v260, %v264
      %v273 = vsub.f32 %v261, %v265
      %vm274 = vcmp.gt.s32.totalorder %v266, 0
      %v275 = vsel %vm274, %v266, 0
      %vm276 = vcmp.gt.s32.totalorder %v267, 0
      %v277 = vsel %vm276, %v267, 0
      %vm278 = vcmp.gt.s32.totalorder %v268, 0
      %v279 = vsel %vm278, %v268, 0
      %vm280 = vcmp.gt.s32.totalorder %v269, 0
      %v281 = vsel %vm280, %v269, 0
      %vm282 = vcmp.lt.s32.totalorder %v275, 14
      %v283 = vsel %vm282, %v275, 14
      %vm284 = vcmp.lt.s32.totalorder %v277, 14
      %v285 = vsel %vm284, %v277, 14
      %vm286 = vcmp.lt.s32.totalorder %v279, 14
      %v287 = vsel %vm286, %v279, 14
      %vm288 = vcmp.lt.s32.totalorder %v281, 14
      %v289 = vsel %vm288, %v281, 14
      %vm290 = vcmp.eq.s32.totalorder %v283, %v266
      %vm291 = vcmp.eq.s32.totalorder %v285, %v267
      %vm292 = vcmp.eq.s32.totalorder %v287, %v268
      %vm293 = vcmp.eq.s32.totalorder %v289, %v269
      %v294 = vsub.f32 1.0, %v270
      %v295 = vsub.f32 1.0, %v271
      %v296 = vsub.f32 1.0, %v272
      %v297 = vsub.f32 1.0, %v273
      %v298 = vsel %vm290, %v294, 0.0
      %v299 = vsel %vm291, %v295, 0.0
      %v300 = vsel %vm292, %v296, 0.0
      %v301 = vsel %vm293, %v297, 0.0
      %v302 = vadd.s32 %v266, 1
      %v303 = vadd.s32 %v267, 1
      %v304 = vadd.s32 %v268, 1
      %v305 = vadd.s32 %v269, 1
      %vm306 = vcmp.eq.s32.totalorder %v283, %v302
      %vm307 = vcmp.eq.s32.totalorder %v285, %v303
      %vm308 = vcmp.eq.s32.totalorder %v287, %v304
      %vm309 = vcmp.eq.s32.totalorder %v289, %v305
      %v310 = vsel %vm306, %v270, 0.0
      %v311 = vsel %vm307, %v271, 0.0
      %v312 = vsel %vm308, %v272, 0.0
      %v313 = vsel %vm309, %v273, 0.0
      %v314 = vadd.f32 %v298, %v310
      %v315 = vadd.f32 %v299, %v311
      %v316 = vadd.f32 %v300, %v312
      %v317 = vadd.f32 %v301, %v313
      %v318 = vadd.s32 %v283, 1
      %v319 = vadd.s32 %v285, 1
      %v320 = vadd.s32 %v287, 1
      %v321 = vadd.s32 %v289, 1
      %vm322 = vcmp.eq.s32.totalorder %v318, %v266
      %vm323 = vcmp.eq.s32.totalorder %v319, %v267
      %vm324 = vcmp.eq.s32.totalorder %v320, %v268
      %vm325 = vcmp.eq.s32.totalorder %v321, %v269
      %v326 = vsel %vm322, %v294, 0.0
      %v327 = vsel %vm323, %v295, 0.0
      %v328 = vsel %vm324, %v296, 0.0
      %v329 = vsel %vm325, %v297, 0.0
      %vm330 = vcmp.eq.s32.totalorder %v318, %v302
      %vm331 = vcmp.eq.s32.totalorder %v319, %v303
      %vm332 = vcmp.eq.s32.totalorder %v320, %v304
      %vm333 = vcmp.eq.s32.totalorder %v321, %v305
      %v334 = vsel %vm330, %v270, 0.0
      %v335 = vsel %vm331, %v271, 0.0
      %v336 = vsel %vm332, %v272, 0.0
      %v337 = vsel %vm333, %v273, 0.0
      %v338 = vadd.f32 %v326, %v334
      %v339 = vadd.f32 %v327, %v335
      %v340 = vadd.f32 %v328, %v336
      %v341 = vadd.f32 %v329, %v337
      %s342 = scalar_lea.vmem %s222, 32
      %v343 = vld [vmem:[%s342] sm:$0xff]
      %v344 = vld [vmem:[%s342 + $0x8] sm:$0xff]
      %v345 = vld [vmem:[%s342 + $0x10] sm:$0xff]
      %v346 = vld [vmem:[%s342 + $0x18] sm:$0xff]
      %s347 = scalar_lea.vmem %s231, 32
      %v348 = vld [vmem:[%s347] sm:$0xff]
      %v349 = vld [vmem:[%s347 + $0x8] sm:$0xff]
      %v350 = vld [vmem:[%s347 + $0x10] sm:$0xff]
      %v351 = vld [vmem:[%s347 + $0x18] sm:$0xff]
      %v352 = vadd.f32 %v343, %v348
      %v353 = vadd.f32 %v344, %v349
      %v354 = vadd.f32 %v345, %v350
      %v355 = vadd.f32 %v346, %v351
      %v356 = vfloor.f32 %v352
      %v357 = vfloor.f32 %v353
      %v358 = vfloor.f32 %v354
      %v359 = vfloor.f32 %v355
      %v360 = vcvt.f32.s32.to.zero.pseudo %v356
      %v361 = vcvt.f32.s32.to.zero.pseudo %v357
      %v362 = vcvt.f32.s32.to.zero.pseudo %v358
      %v363 = vcvt.f32.s32.to.zero.pseudo %v359
      %v364 = vsub.f32 %v352, %v356
      %v365 = vsub.f32 %v353, %v357
      %v366 = vsub.f32 %v354, %v358
      %v367 = vsub.f32 %v355, %v359
      %vm368 = vcmp.gt.s32.totalorder %v360, 0
      %v369 = vsel %vm368, %v360, 0
      %vm370 = vcmp.gt.s32.totalorder %v361, 0
      %v371 = vsel %vm370, %v361, 0
      %vm372 = vcmp.gt.s32.totalorder %v362, 0
      %v373 = vsel %vm372, %v362, 0
      %vm374 = vcmp.gt.s32.totalorder %v363, 0
      %v375 = vsel %vm374, %v363, 0
      %vm376 = vcmp.lt.s32.totalorder %v369, 14
      %v377 = vsel %vm376, %v369, 14
      %vm378 = vcmp.lt.s32.totalorder %v371, 14
      %v379 = vsel %vm378, %v371, 14
      %vm380 = vcmp.lt.s32.totalorder %v373, 14
      %v381 = vsel %vm380, %v373, 14
      %vm382 = vcmp.lt.s32.totalorder %v375, 14
      %v383 = vsel %vm382, %v375, 14
      %vm384 = vcmp.eq.s32.totalorder %v377, %v360
      %vm385 = vcmp.eq.s32.totalorder %v379, %v361
      %vm386 = vcmp.eq.s32.totalorder %v381, %v362
      %vm387 = vcmp.eq.s32.totalorder %v383, %v363
      %v388 = vsub.f32 1.0, %v364
      %v389 = vsub.f32 1.0, %v365
      %v390 = vsub.f32 1.0, %v366
      %v391 = vsub.f32 1.0, %v367
      %v392 = vsel %vm384, %v388, 0.0
      %v393 = vsel %vm385, %v389, 0.0
      %v394 = vsel %vm386, %v390, 0.0
      %v395 = vsel %vm387, %v391, 0.0
      %v396 = vadd.s32 %v360, 1
      %v397 = vadd.s32 %v361, 1
      %v398 = vadd.s32 %v362, 1
      %v399 = vadd.s32 %v363, 1
      %vm400 = vcmp.eq.s32.totalorder %v377, %v396
      %vm401 = vcmp.eq.s32.totalorder %v379, %v397
      %vm402 = vcmp.eq.s32.totalorder %v381, %v398
      %vm403 = vcmp.eq.s32.totalorder %v383, %v399
      %v404 = vsel %vm400, %v364, 0.0
      %v405 = vsel %vm401, %v365, 0.0
      %v406 = vsel %vm402, %v366, 0.0
      %v407 = vsel %vm403, %v367, 0.0
      %v408 = vadd.f32 %v392, %v404
      %v409 = vadd.f32 %v393, %v405
      %v410 = vadd.f32 %v394, %v406
      %v411 = vadd.f32 %v395, %v407
      %v412 = vadd.s32 %v377, 1
      %v413 = vadd.s32 %v379, 1
      %v414 = vadd.s32 %v381, 1
      %v415 = vadd.s32 %v383, 1
      %vm416 = vcmp.eq.s32.totalorder %v412, %v360
      %vm417 = vcmp.eq.s32.totalorder %v413, %v361
      %vm418 = vcmp.eq.s32.totalorder %v414, %v362
      %vm419 = vcmp.eq.s32.totalorder %v415, %v363
      %v420 = vsel %vm416, %v388, 0.0
      %v421 = vsel %vm417, %v389, 0.0
      %v422 = vsel %vm418, %v390, 0.0
      %v423 = vsel %vm419, %v391, 0.0
      %vm424 = vcmp.eq.s32.totalorder %v412, %v396
      %vm425 = vcmp.eq.s32.totalorder %v413, %v397
      %vm426 = vcmp.eq.s32.totalorder %v414, %v398
      %vm427 = vcmp.eq.s32.totalorder %v415, %v399
      %v428 = vsel %vm424, %v364, 0.0
      %v429 = vsel %vm425, %v365, 0.0
      %v430 = vsel %vm426, %v366, 0.0
      %v431 = vsel %vm427, %v367, 0.0
      %v432 = vadd.f32 %v420, %v428
      %v433 = vadd.f32 %v421, %v429
      %v434 = vadd.f32 %v422, %v430
      %v435 = vadd.f32 %v423, %v431
      %s436 = scalar_lea.vmem %s222, 64
      %v437 = vld [vmem:[%s436] sm:$0xff]
      %v438 = vld [vmem:[%s436 + $0x8] sm:$0xff]
      %v439 = vld [vmem:[%s436 + $0x10] sm:$0xff]
      %v440 = vld [vmem:[%s436 + $0x18] sm:$0xff]
      %s441 = scalar_lea.vmem %s231, 64
      %v442 = vld [vmem:[%s441] sm:$0xff]
      %v443 = vld [vmem:[%s441 + $0x8] sm:$0xff]
      %v444 = vld [vmem:[%s441 + $0x10] sm:$0xff]
      %v445 = vld [vmem:[%s441 + $0x18] sm:$0xff]
      %v446 = vadd.f32 %v437, %v442
      %v447 = vadd.f32 %v438, %v443
      %v448 = vadd.f32 %v439, %v444
      %v449 = vadd.f32 %v440, %v445
      %v450 = vfloor.f32 %v446
      %v451 = vfloor.f32 %v447
      %v452 = vfloor.f32 %v448
      %v453 = vfloor.f32 %v449
      %v454 = vcvt.f32.s32.to.zero.pseudo %v450
      %v455 = vcvt.f32.s32.to.zero.pseudo %v451
      %v456 = vcvt.f32.s32.to.zero.pseudo %v452
      %v457 = vcvt.f32.s32.to.zero.pseudo %v453
      %v458 = vsub.f32 %v446, %v450
      %v459 = vsub.f32 %v447, %v451
      %v460 = vsub.f32 %v448, %v452
      %v461 = vsub.f32 %v449, %v453
      %vm462 = vcmp.gt.s32.totalorder %v454, 0
      %v463 = vsel %vm462, %v454, 0
      %vm464 = vcmp.gt.s32.totalorder %v455, 0
      %v465 = vsel %vm464, %v455, 0
      %vm466 = vcmp.gt.s32.totalorder %v456, 0
      %v467 = vsel %vm466, %v456, 0
      %vm468 = vcmp.gt.s32.totalorder %v457, 0
      %v469 = vsel %vm468, %v457, 0
      %vm470 = vcmp.lt.s32.totalorder %v463, 14
      %v471 = vsel %vm470, %v463, 14
      %vm472 = vcmp.lt.s32.totalorder %v465, 14
      %v473 = vsel %vm472, %v465, 14
      %vm474 = vcmp.lt.s32.totalorder %v467, 14
      %v475 = vsel %vm474, %v467, 14
      %vm476 = vcmp.lt.s32.totalorder %v469, 14
      %v477 = vsel %vm476, %v469, 14
      %vm478 = vcmp.eq.s32.totalorder %v471, %v454
      %vm479 = vcmp.eq.s32.totalorder %v473, %v455
      %vm480 = vcmp.eq.s32.totalorder %v475, %v456
      %vm481 = vcmp.eq.s32.totalorder %v477, %v457
      %v482 = vsub.f32 1.0, %v458
      %v483 = vsub.f32 1.0, %v459
      %v484 = vsub.f32 1.0, %v460
      %v485 = vsub.f32 1.0, %v461
      %v486 = vsel %vm478, %v482, 0.0
      %v487 = vsel %vm479, %v483, 0.0
      %v488 = vsel %vm480, %v484, 0.0
      %v489 = vsel %vm481, %v485, 0.0
      %v490 = vadd.s32 %v454, 1
      %v491 = vadd.s32 %v455, 1
      %v492 = vadd.s32 %v456, 1
      %v493 = vadd.s32 %v457, 1
      %vm494 = vcmp.eq.s32.totalorder %v471, %v490
      %vm495 = vcmp.eq.s32.totalorder %v473, %v491
      %vm496 = vcmp.eq.s32.totalorder %v475, %v492
      %vm497 = vcmp.eq.s32.totalorder %v477, %v493
      %v498 = vsel %vm494, %v458, 0.0
      %v499 = vsel %vm495, %v459, 0.0
      %v500 = vsel %vm496, %v460, 0.0
      %v501 = vsel %vm497, %v461, 0.0
      %v502 = vadd.f32 %v486, %v498
      %v503 = vadd.f32 %v487, %v499
      %v504 = vadd.f32 %v488, %v500
      %v505 = vadd.f32 %v489, %v501
      %v506 = vadd.s32 %v471, 1
      %v507 = vadd.s32 %v473, 1
      %v508 = vadd.s32 %v475, 1
      %v509 = vadd.s32 %v477, 1
      %vm510 = vcmp.eq.s32.totalorder %v506, %v454
      %vm511 = vcmp.eq.s32.totalorder %v507, %v455
      %vm512 = vcmp.eq.s32.totalorder %v508, %v456
      %vm513 = vcmp.eq.s32.totalorder %v509, %v457
      %v514 = vsel %vm510, %v482, 0.0
      %v515 = vsel %vm511, %v483, 0.0
      %v516 = vsel %vm512, %v484, 0.0
      %v517 = vsel %vm513, %v485, 0.0
      %vm518 = vcmp.eq.s32.totalorder %v506, %v490
      %vm519 = vcmp.eq.s32.totalorder %v507, %v491
      %vm520 = vcmp.eq.s32.totalorder %v508, %v492
      %vm521 = vcmp.eq.s32.totalorder %v509, %v493
      %v522 = vsel %vm518, %v458, 0.0
      %v523 = vsel %vm519, %v459, 0.0
      %v524 = vsel %vm520, %v460, 0.0
      %v525 = vsel %vm521, %v461, 0.0
      %v526 = vadd.f32 %v514, %v522
      %v527 = vadd.f32 %v515, %v523
      %v528 = vadd.f32 %v516, %v524
      %v529 = vadd.f32 %v517, %v525
      %v530 = vmul.u32 %v283, 16
      %v531 = vmul.u32 %v285, 16
      %v532 = vmul.u32 %v287, 16
      %v533 = vmul.u32 %v289, 16
      %v534 = vadd.s32 %v530, %v377
      %v535 = vadd.s32 %v531, %v379
      %v536 = vadd.s32 %v532, %v381
      %v537 = vadd.s32 %v533, %v383
      %v538 = vmul.u32 %v534, 16
      %v539 = vmul.u32 %v535, 16
      %v540 = vmul.u32 %v536, 16
      %v541 = vmul.u32 %v537, 16
      %v542 = vadd.s32 %v538, %v471
      %v543 = vadd.s32 %v539, %v473
      %v544 = vadd.s32 %v540, %v475
      %v545 = vadd.s32 %v541, %v477
      %546 = vst [vmem:[%s240] sm:$0xff] %v542
      %547 = vst [vmem:[%s240 + $0x8] sm:$0xff] %v543
      %548 = vst [vmem:[%s240 + $0x10] sm:$0xff] %v544
      %549 = vst [vmem:[%s240 + $0x18] sm:$0xff] %v545
      %550 = vst [vmem:[%s249] sm:$0xff] %v314
      %551 = vst [vmem:[%s249 + $0x8] sm:$0xff] %v315
      %552 = vst [vmem:[%s249 + $0x10] sm:$0xff] %v316
      %553 = vst [vmem:[%s249 + $0x18] sm:$0xff] %v317
      %s554 = scalar_lea.vmem %s249, 32
      %555 = vst [vmem:[%s554] sm:$0xff] %v338
      %556 = vst [vmem:[%s554 + $0x8] sm:$0xff] %v339
      %557 = vst [vmem:[%s554 + $0x10] sm:$0xff] %v340
      %558 = vst [vmem:[%s554 + $0x18] sm:$0xff] %v341
      %s559 = scalar_lea.vmem %s249, 64
      %560 = vst [vmem:[%s559] sm:$0xff] %v408
      %561 = vst [vmem:[%s559 + $0x8] sm:$0xff] %v409
      %562 = vst [vmem:[%s559 + $0x10] sm:$0xff] %v410
      %563 = vst [vmem:[%s559 + $0x18] sm:$0xff] %v411
      %s564 = scalar_lea.vmem %s249, 96
      %565 = vst [vmem:[%s564] sm:$0xff] %v432
      %566 = vst [vmem:[%s564 + $0x8] sm:$0xff] %v433
      %567 = vst [vmem:[%s564 + $0x10] sm:$0xff] %v434
      %568 = vst [vmem:[%s564 + $0x18] sm:$0xff] %v435
      %s569 = scalar_lea.vmem %s249, 128
      %570 = vst [vmem:[%s569] sm:$0xff] %v502
      %571 = vst [vmem:[%s569 + $0x8] sm:$0xff] %v503
      %572 = vst [vmem:[%s569 + $0x10] sm:$0xff] %v504
      %573 = vst [vmem:[%s569 + $0x18] sm:$0xff] %v505
      %s574 = scalar_lea.vmem %s249, 160
      %575 = vst [vmem:[%s574] sm:$0xff] %v526
      %576 = vst [vmem:[%s574 + $0x8] sm:$0xff] %v527
      %577 = vst [vmem:[%s574 + $0x10] sm:$0xff] %v528
      %578 = vst [vmem:[%s574 + $0x18] sm:$0xff] %v529
      %p579 = scmp.lt.s32.totalorder %s19, 1
      %s580 = scalar_select %p579, %s19, 1
      %p581 = scmp.lt.s32.totalorder %s20, 0
      %s582 = scalar_select %p581, %s20, 0
      %s583 = smul.addr %s582, 4
      %s584 = smul.addr %s580, 4
      %s585 = sadd.s32 %s583, %s584
      %s586 = smul.addr %s585, 8
      %s587 = scalar_lea.vmem %s2, %s586
      %p588 = scmp.lt.s32.totalorder %s19, 1
      %s589 = scalar_select %p588, %s19, 1
      %p590 = scmp.lt.s32.totalorder %s20, 0
      %s591 = scalar_select %p590, %s20, 0
      %s592 = smul.addr %s591, 4
      %s593 = smul.addr %s589, 24
      %s594 = sadd.s32 %s592, %s593
      %s595 = smul.addr %s594, 8
      %s596 = scalar_lea.vmem %s3, %s595
      // Predicated region
      $region29: #{spatial_transformer.2} parent=27 // pred_check
        %p597 = pneg %p101
      $region30: #{spatial_transformer.2} parent=27 // pred_check_branch
        %599 = sbr.rel (%p597) target = $region32
      $region31: #{spatial_transformer.2} parent=27 // pred_region
        _
      $region32: #{spatial_transformer.2} parent=27 // pred_fallthru
        _
      // Predicated region
      $region33: #{spatial_transformer.2} parent=27 // pred_check
        %p600 = pneg %p129
      $region34: #{spatial_transformer.2} parent=27 // pred_check_branch
        %602 = sbr.rel (%p600) target = $region36
      $region35: #{spatial_transformer.2} parent=27 // pred_region
        _
      $region36: #{spatial_transformer.2} parent=27 // pred_fallthru
        _
    $region28: #{spatial_transformer.2} parent=5 // pred_fallthru
      _
    %p603 = scmp.le.s32.totalorder 2, %s10
    // Predicated region
    $region37: #{spatial_transformer.2} parent=5 // pred_check
      %p604 = pneg %p603
    $region38: #{spatial_transformer.2} parent=5 // pred_check_branch
      %606 = sbr.rel (%p604) target = $region40
    $region39: #{spatial_transformer.2} parent=5 // pred_region
      %s607 = ssub.s32 %s10, 2
      // Predicated region
      $region41: #{spatial_transformer.2} parent=39 // pred_check
        %p608 = pneg %p107
      $region42: #{spatial_transformer.2} parent=39 // pred_check_branch
        %610 = sbr.rel (%p608) target = $region44
      $region43: #{spatial_transformer.2} parent=39 // pred_region
        %p611 = scmp.lt.s32.totalorder %s21, 1
        %s612 = scalar_select %p611, %s21, 1
        %p613 = scmp.lt.s32.totalorder %s22, 0
        %s614 = scalar_select %p613, %s22, 0
        %s615 = smul.addr %s614, 4
        %s616 = smul.addr %s612, 4
        %s617 = sadd.s32 %s615, %s616
        %s618 = smul.addr %s617, 8
        %s619 = scalar_lea.vmem %s2, %s618
      $region44: #{spatial_transformer.2} parent=39 // pred_fallthru
        _
      // Predicated region
      $region45: #{spatial_transformer.2} parent=39 // pred_check
        %p620 = pneg %p135
      $region46: #{spatial_transformer.2} parent=39 // pred_check_branch
        %622 = sbr.rel (%p620) target = $region48
      $region47: #{spatial_transformer.2} parent=39 // pred_region
        %p623 = scmp.lt.s32.totalorder %s21, 1
        %s624 = scalar_select %p623, %s21, 1
        %p625 = scmp.lt.s32.totalorder %s22, 0
        %s626 = scalar_select %p625, %s22, 0
        %s627 = smul.addr %s626, 4
        %s628 = smul.addr %s624, 24
        %s629 = sadd.s32 %s627, %s628
        %s630 = smul.addr %s629, 8
        %s631 = scalar_lea.vmem %s3, %s630
      $region48: #{spatial_transformer.2} parent=39 // pred_fallthru
        _
    $region40: #{spatial_transformer.2} parent=5 // pred_fallthru
      _
  $region6: #{spatial_transformer.2} parent=0 // loop_footer
    %s14 = sadd.s32 1, %s10
  $region7: #{spatial_transformer.2} parent=0 // loop_footer_branch
    %9 = sbr.rel target = $region3
  $region8: #{spatial_transformer.2} parent=0 // loop_exit
    _

// kernel: spatial_transformer.3
$region0: #{spatial_transformer.3}
  #allocation0 [shape = 'u32[]', space=smem, size = 0x4, offset = 0x4, fixed_abs, tag = 'smem constant byte address 0x4 - core index']
  #allocation1 [shape = 'u32[144,128]{1,0:T(1,128)}', space=vmem, size = 0x12000, scoped, tag = 'internal scratch']
  %s0 = inlined_call_operand.vmem [shape: f32[2,6,8,512], index: 0, kind: input, shape index: {}]
  %s1 = inlined_call_operand.vmem [shape: f32[2,2,8,8,512], index: 1, kind: input, shape index: {}]
  %s2 = inlined_call_operand.vmem [shape: f32[2,2,8,512], index: 2, kind: output, shape index: {}]
  %s3 = sld [smem:[#allocation0]]
  $region41: #{spatial_transformer.3} parent=0
    _
  %s5 = ssub.s32 1, %s3
  %s6 = scalar_select 0, %s5, %s3
  loop: start=0, step=1, limit=4
  $region2: #{spatial_transformer.3} parent=0 // loop_pre_header
    _
  $region3: #{spatial_transformer.3} parent=0 // loop_header
    %s8 = sphi 0, %s12
    %p9 = scmp.ge.s32.totalorder %s8, 4
    %s15 = sphi 0, %s27
    %s16 = sphi 0, %s23
    %s17 = sphi 0, %s15
    %s18 = sphi 0, %s16
    %s19 = sphi 0, %s17
    %s20 = sphi 0, %s18
    %s32 = sphi 0, %s34
    %s35 = sphi 0, %s32
    %s36 = sphi 0, %s35
    %s52 = sphi 0, %s36
    %s60 = sphi 0, %s62
    %s63 = sphi 0, %s60
    %s64 = sphi 0, %s63
    %s80 = sphi 0, %s64
    %s88 = sphi 0, %s90
    %s91 = sphi 0, %s88
    %s92 = sphi 0, %s91
    %s108 = sphi 0, %s92
  $region4: #{spatial_transformer.3} parent=0 // loop_header_branch
    %11 = sbr.rel (%p9) target = $region8
  $region5: #{spatial_transformer.3} parent=0 // loop_body
    %s13 = ssub.s32 %s8, 1
    %s14 = ssub.s32 %s8, 2
    %s21 = sadd.s32 1, %s16
    %p22 = scmp.ge.s32.totalorder %s21, 1
    %s23 = scalar_select %p22, 0, %s21
    %s24 = sadd.s32 1, %s15
    %s25 = scalar_select %p22, %s24, %s15
    %p26 = scmp.ge.s32.totalorder %s25, 2
    %s27 = scalar_select %p26, 0, %s25
    %s28 = ssub.s32 %s15, %s27
    %s29 = ssub.s32 %s16, %s23
    %s30 = sor.u32 %s28, %s29
    %p31 = scmp.eq.s32.totalorder %s30, 0
    %s33 = sadd.s32 %s32, 1
    %s34 = scalar_select %p31, %s32, %s33
    %p37 = pneg %p31
    %p38 = scmp.eq.s32.totalorder %s8, 1
    %p39 = por %p37, %p38
    %p40 = scmp.ne.s32.totalorder %s32, %s35
    %p41 = scmp.eq.s32.totalorder %s8, 0
    %p42 = por %p40, %p41
    %p43 = scmp.ne.s32.totalorder %s32, %s35
    %p44 = scmp.eq.s32.totalorder %s13, 1
    %p45 = por %p43, %p44
    %p46 = scmp.ne.s32.totalorder %s35, %s36
    %p47 = scmp.eq.s32.totalorder %s13, 0
    %p48 = por %p46, %p47
    %p49 = scmp.ne.s32.totalorder %s35, %s36
    %p50 = scmp.eq.s32.totalorder %s14, 1
    %p51 = por %p49, %p50
    %p53 = scmp.ne.s32.totalorder %s36, %s52
    %p54 = scmp.eq.s32.totalorder %s14, 0
    %p55 = por %p53, %p54
    %s56 = ssub.s32 %s15, %s27
    %s57 = ssub.s32 %s16, %s23
    %s58 = sor.u32 %s56, %s57
    %p59 = scmp.eq.s32.totalorder %s58, 0
    %s61 = sadd.s32 %s60, 1
    %s62 = scalar_select %p59, %s60, %s61
    %p65 = pneg %p59
    %p66 = scmp.eq.s32.totalorder %s8, 1
    %p67 = por %p65, %p66
    %p68 = scmp.ne.s32.totalorder %s60, %s63
    %p69 = scmp.eq.s32.totalorder %s8, 0
    %p70 = por %p68, %p69
    %p71 = scmp.ne.s32.totalorder %s60, %s63
    %p72 = scmp.eq.s32.totalorder %s13, 1
    %p73 = por %p71, %p72
    %p74 = scmp.ne.s32.totalorder %s63, %s64
    %p75 = scmp.eq.s32.totalorder %s13, 0
    %p76 = por %p74, %p75
    %p77 = scmp.ne.s32.totalorder %s63, %s64
    %p78 = scmp.eq.s32.totalorder %s14, 1
    %p79 = por %p77, %p78
    %p81 = scmp.ne.s32.totalorder %s64, %s80
    %p82 = scmp.eq.s32.totalorder %s14, 0
    %p83 = por %p81, %p82
    %s84 = ssub.s32 %s15, %s27
    %s85 = ssub.s32 %s16, %s23
    %s86 = sor.u32 %s84, %s85
    %p87 = scmp.eq.s32.totalorder %s86, 0
    %s89 = sadd.s32 %s88, 1
    %s90 = scalar_select %p87, %s88, %s89
    %p93 = pneg %p87
    %p94 = scmp.eq.s32.totalorder %s8, 1
    %p95 = por %p93, %p94
    %p96 = scmp.ne.s32.totalorder %s88, %s91
    %p97 = scmp.eq.s32.totalorder %s8, 0
    %p98 = por %p96, %p97
    %p99 = scmp.ne.s32.totalorder %s88, %s91
    %p100 = scmp.eq.s32.totalorder %s13, 1
    %p101 = por %p99, %p100
    %p102 = scmp.ne.s32.totalorder %s91, %s92
    %p103 = scmp.eq.s32.totalorder %s13, 0
    %p104 = por %p102, %p103
    %p105 = scmp.ne.s32.totalorder %s91, %s92
    %p106 = scmp.eq.s32.totalorder %s14, 1
    %p107 = por %p105, %p106
    %p109 = scmp.ne.s32.totalorder %s92, %s108
    %p110 = scmp.eq.s32.totalorder %s14, 0
    %p111 = por %p109, %p110
    %p112 = scmp.le.s32.totalorder 1, %s8
    %p113 = scmp.lt.s32.totalorder %s8, 3
    %p114 = pnand %p112, %p113
    %p115 = pneg %p114
    // Predicated region
    $region9: #{spatial_transformer.3} parent=5 // pred_check
      _
    $region10: #{spatial_transformer.3} parent=5 // pred_check_branch
      %117 = sbr.rel (%p114) target = $region12
    $region11: #{spatial_transformer.3} parent=5 // pred_region
      %s118 = ssub.s32 %s8, 1
    $region12: #{spatial_transformer.3} parent=5 // pred_fallthru
      _
    %p119 = scmp.lt.s32.totalorder %s8, 2
    // Predicated region
    $region13: #{spatial_transformer.3} parent=5 // pred_check
      %p120 = pneg %p119
    $region14: #{spatial_transformer.3} parent=5 // pred_check_branch
      %122 = sbr.rel (%p120) target = $region16
    $region15: #{spatial_transformer.3} parent=5 // pred_region
      // Predicated region
      $region17: #{spatial_transformer.3} parent=15 // pred_check
        %p123 = pneg %p42
      $region18: #{spatial_transformer.3} parent=15 // pred_check_branch
        %125 = sbr.rel (%p123) target = $region20
      $region19: #{spatial_transformer.3} parent=15 // pred_region
        %p126 = scmp.lt.s32.totalorder %s15, 1
        %s127 = scalar_select %p126, %s15, 1
        %p128 = scmp.lt.s32.totalorder %s16, 0
        %s129 = scalar_select %p128, %s16, 0
        %s130 = smul.addr %s129, 4
        %s131 = smul.addr %s127, 24
        %s132 = sadd.s32 %s130, %s131
        %s133 = smul.addr %s132, 8
        %s134 = scalar_lea.vmem %s0, %s133
      $region20: #{spatial_transformer.3} parent=15 // pred_fallthru
        _
      // Predicated region
      $region21: #{spatial_transformer.3} parent=15 // pred_check
        %p135 = pneg %p70
      $region22: #{spatial_transformer.3} parent=15 // pred_check_branch
        %137 = sbr.rel (%p135) target = $region24
      $region23: #{spatial_transformer.3} parent=15 // pred_region
        %p138 = scmp.lt.s32.totalorder %s15, 1
        %s139 = scalar_select %p138, %s15, 1
        %p140 = scmp.lt.s32.totalorder %s16, 0
        %s141 = scalar_select %p140, %s16, 0
        %s142 = smul.addr %s141, 4
        %s143 = smul.addr %s139, 64
        %s144 = sadd.s32 %s142, %s143
        %s145 = smul.addr %s144, 8
        %s146 = scalar_lea.vmem %s1, %s145
      $region24: #{spatial_transformer.3} parent=15 // pred_fallthru
        _
    $region16: #{spatial_transformer.3} parent=5 // pred_fallthru
      _
    %p147 = scmp.le.s32.totalorder 1, %s8
    %p148 = scmp.lt.s32.totalorder %s8, 3
    %p149 = pnand %p147, %p148
    %p150 = pneg %p149
    // Predicated region
    $region25: #{spatial_transformer.3} parent=5 // pred_check
      _
    $region26: #{spatial_transformer.3} parent=5 // pred_check_branch
      %152 = sbr.rel (%p149) target = $region28
    $region27: #{spatial_transformer.3} parent=5 // pred_region
      %s153 = ssub.s32 %s8, 1
      %p154 = scmp.lt.s32.totalorder %s17, 1
      %s155 = scalar_select %p154, %s17, 1
      %p156 = scmp.lt.s32.totalorder %s18, 0
      %s157 = scalar_select %p156, %s18, 0
      %s158 = smul.addr %s157, 4
      %s159 = smul.addr %s155, 24
      %s160 = sadd.s32 %s158, %s159
      %s161 = smul.addr %s160, 8
      %s162 = scalar_lea.vmem %s0, %s161
      %p163 = pneg %p48
      %p164 = pneg %p45
      %p165 = scmp.lt.s32.totalorder %s17, 1
      %s166 = scalar_select %p165, %s17, 1
      %p167 = scmp.lt.s32.totalorder %s18, 0
      %s168 = scalar_select %p167, %s18, 0
      %s169 = smul.addr %s168, 4
      %s170 = smul.addr %s166, 64
      %s171 = sadd.s32 %s169, %s170
      %s172 = smul.addr %s171, 8
      %s173 = scalar_lea.vmem %s1, %s172
      %p174 = pneg %p76
      %p175 = pneg %p73
      %p176 = pneg %p104
      %p177 = pneg %p101
      %p178 = scmp.lt.s32.totalorder %s17, 1
      %s179 = scalar_select %p178, %s17, 1
      %p180 = scmp.lt.s32.totalorder %s18, 0
      %s181 = scalar_select %p180, %s18, 0
      %s182 = smul.addr %s181, 4
      %s183 = smul.addr %s179, 8
      %s184 = sadd.s32 %s182, %s183
      %s185 = smul.addr %s184, 8
      %s186 = scalar_lea.vmem %s2, %s185
      %p187 = scmp.lt.s32.totalorder %s17, 1
      %s188 = scalar_select %p187, %s17, 1
      %p189 = scmp.lt.s32.totalorder %s18, 0
      %s190 = scalar_select %p189, %s18, 0
      %s191 = smul.addr %s190, 4
      %s192 = smul.addr %s188, 24
      %s193 = sadd.s32 %s191, %s192
      %s194 = smul.addr %s193, 8
      %s195 = scalar_lea.vmem %s0, %s194
      %p196 = scmp.lt.s32.totalorder %s17, 1
      %s197 = scalar_select %p196, %s17, 1
      %p198 = scmp.lt.s32.totalorder %s18, 0
      %s199 = scalar_select %p198, %s18, 0
      %s200 = smul.addr %s199, 4
      %s201 = smul.addr %s197, 64
      %s202 = sadd.s32 %s200, %s201
      %s203 = smul.addr %s202, 8
      %s204 = scalar_lea.vmem %s1, %s203
      %p205 = scmp.lt.s32.totalorder %s17, 1
      %s206 = scalar_select %p205, %s17, 1
      %p207 = scmp.lt.s32.totalorder %s18, 0
      %s208 = scalar_select %p207, %s18, 0
      %s209 = smul.addr %s208, 4
      %s210 = smul.addr %s206, 8
      %s211 = sadd.s32 %s209, %s210
      %s212 = smul.addr %s211, 8
      %s213 = scalar_lea.vmem %s2, %s212
      %v214 = vld [vmem:[%s195] sm:$0xff]
      %v215 = vld [vmem:[%s195 + $0x8] sm:$0xff]
      %v216 = vld [vmem:[%s195 + $0x10] sm:$0xff]
      %v217 = vld [vmem:[%s195 + $0x18] sm:$0xff]
      %s218 = scalar_lea.vmem %s195, 64
      %v219 = vld [vmem:[%s218] sm:$0xff]
      %v220 = vld [vmem:[%s218 + $0x8] sm:$0xff]
      %v221 = vld [vmem:[%s218 + $0x10] sm:$0xff]
      %v222 = vld [vmem:[%s218 + $0x18] sm:$0xff]
      %v223 = vmul.f32 %v214, %v219
      %v224 = vmul.f32 %v215, %v220
      %v225 = vmul.f32 %v216, %v221
      %v226 = vmul.f32 %v217, %v222
      %s227 = scalar_lea.vmem %s195, 128
      %v228 = vld [vmem:[%s227] sm:$0xff]
      %v229 = vld [vmem:[%s227 + $0x8] sm:$0xff]
      %v230 = vld [vmem:[%s227 + $0x10] sm:$0xff]
      %v231 = vld [vmem:[%s227 + $0x18] sm:$0xff]
      %v232 = vmul.f32 %v223, %v228
      %v233 = vmul.f32 %v224, %v229
      %v234 = vmul.f32 %v225, %v230
      %v235 = vmul.f32 %v226, %v231
      %v236 = vld [vmem:[%s204] sm:$0xff]
      %v237 = vld [vmem:[%s204 + $0x8] sm:$0xff]
      %v238 = vld [vmem:[%s204 + $0x10] sm:$0xff]
      %v239 = vld [vmem:[%s204 + $0x18] sm:$0xff]
      %v240 = vmul.f32 %v232, %v236
      %v241 = vmul.f32 %v233, %v237
      %v242 = vmul.f32 %v234, %v238
      %v243 = vmul.f32 %v235, %v239
      %s244 = scalar_lea.vmem %s204, 256
      %v245 = vld [vmem:[%s244] sm:$0xff]
      %v246 = vld [vmem:[%s244 + $0x8] sm:$0xff]
      %v247 = vld [vmem:[%s244 + $0x10] sm:$0xff]
      %v248 = vld [vmem:[%s244 + $0x18] sm:$0xff]
      %v249 = vmul.f32 %v232, %v245
      %v250 = vmul.f32 %v233, %v246
      %v251 = vmul.f32 %v234, %v247
      %v252 = vmul.f32 %v235, %v248
      %s253 = scalar_lea.vmem %s195, 160
      %v254 = vld [vmem:[%s253] sm:$0xff]
      %v255 = vld [vmem:[%s253 + $0x8] sm:$0xff]
      %v256 = vld [vmem:[%s253 + $0x10] sm:$0xff]
      %v257 = vld [vmem:[%s253 + $0x18] sm:$0xff]
      %v258 = vmul.f32 %v223, %v254
      %v259 = vmul.f32 %v224, %v255
      %v260 = vmul.f32 %v225, %v256
      %v261 = vmul.f32 %v226, %v257
      %s262 = scalar_lea.vmem %s204, 32
      %v263 = vld [vmem:[%s262] sm:$0xff]
      %v264 = vld [vmem:[%s262 + $0x8] sm:$0xff]
      %v265 = vld [vmem:[%s262 + $0x10] sm:$0xff]
      %v266 = vld [vmem:[%s262 + $0x18] sm:$0xff]
      %v267 = vmul.f32 %v258, %v263
      %v268 = vmul.f32 %v259, %v264
      %v269 = vmul.f32 %v260, %v265
      %v270 = vmul.f32 %v261, %v266
      %v271 = vadd.f32 %v240, %v267
      %v272 = vadd.f32 %v241, %v268
      %v273 = vadd.f32 %v242, %v269
      %v274 = vadd.f32 %v243, %v270
      %s275 = scalar_lea.vmem %s204, 288
      %v276 = vld [vmem:[%s275] sm:$0xff]
      %v277 = vld [vmem:[%s275 + $0x8] sm:$0xff]
      %v278 = vld [vmem:[%s275 + $0x10] sm:$0xff]
      %v279 = vld [vmem:[%s275 + $0x18] sm:$0xff]
      %v280 = vmul.f32 %v258, %v276
      %v281 = vmul.f32 %v259, %v277
      %v282 = vmul.f32 %v260, %v278
      %v283 = vmul.f32 %v261, %v279
      %v284 = vadd.f32 %v249, %v280
      %v285 = vadd.f32 %v250, %v281
      %v286 = vadd.f32 %v251, %v282
      %v287 = vadd.f32 %v252, %v283
      %s288 = scalar_lea.vmem %s195, 96
      %v289 = vld [vmem:[%s288] sm:$0xff]
      %v290 = vld [vmem:[%s288 + $0x8] sm:$0xff]
      %v291 = vld [vmem:[%s288 + $0x10] sm:$0xff]
      %v292 = vld [vmem:[%s288 + $0x18] sm:$0xff]
      %v293 = vmul.f32 %v214, %v289
      %v294 = vmul.f32 %v215, %v290
      %v295 = vmul.f32 %v216, %v291
      %v296 = vmul.f32 %v217, %v292
      %v297 = vmul.f32 %v293, %v228
      %v298 = vmul.f32 %v294, %v229
      %v299 = vmul.f32 %v295, %v230
      %v300 = vmul.f32 %v296, %v231
      %s301 = scalar_lea.vmem %s204, 64
      %v302 = vld [vmem:[%s301] sm:$0xff]
      %v303 = vld [vmem:[%s301 + $0x8] sm:$0xff]
      %v304 = vld [vmem:[%s301 + $0x10] sm:$0xff]
      %v305 = vld [vmem:[%s301 + $0x18] sm:$0xff]
      %v306 = vmul.f32 %v297, %v302
      %v307 = vmul.f32 %v298, %v303
      %v308 = vmul.f32 %v299, %v304
      %v309 = vmul.f32 %v300, %v305
      %v310 = vadd.f32 %v271, %v306
      %v311 = vadd.f32 %v272, %v307
      %v312 = vadd.f32 %v273, %v308
      %v313 = vadd.f32 %v274, %v309
      %s314 = scalar_lea.vmem %s204, 320
      %v315 = vld [vmem:[%s314] sm:$0xff]
      %v316 = vld [vmem:[%s314 + $0x8] sm:$0xff]
      %v317 = vld [vmem:[%s314 + $0x10] sm:$0xff]
      %v318 = vld [vmem:[%s314 + $0x18] sm:$0xff]
      %v319 = vmul.f32 %v297, %v315
      %v320 = vmul.f32 %v298, %v316
      %v321 = vmul.f32 %v299, %v317
      %v322 = vmul.f32 %v300, %v318
      %v323 = vadd.f32 %v284, %v319
      %v324 = vadd.f32 %v285, %v320
      %v325 = vadd.f32 %v286, %v321
      %v326 = vadd.f32 %v287, %v322
      %v327 = vmul.f32 %v293, %v254
      %v328 = vmul.f32 %v294, %v255
      %v329 = vmul.f32 %v295, %v256
      %v330 = vmul.f32 %v296, %v257
      %s331 = scalar_lea.vmem %s204, 96
      %v332 = vld [vmem:[%s331] sm:$0xff]
      %v333 = vld [vmem:[%s331 + $0x8] sm:$0xff]
      %v334 = vld [vmem:[%s331 + $0x10] sm:$0xff]
      %v335 = vld [vmem:[%s331 + $0x18] sm:$0xff]
      %v336 = vmul.f32 %v327, %v332
      %v337 = vmul.f32 %v328, %v333
      %v338 = vmul.f32 %v329, %v334
      %v339 = vmul.f32 %v330, %v335
      %v340 = vadd.f32 %v310, %v336
      %v341 = vadd.f32 %v311, %v337
      %v342 = vadd.f32 %v312, %v338
      %v343 = vadd.f32 %v313, %v339
      %s344 = scalar_lea.vmem %s204, 352
      %v345 = vld [vmem:[%s344] sm:$0xff]
      %v346 = vld [vmem:[%s344 + $0x8] sm:$0xff]
      %v347 = vld [vmem:[%s344 + $0x10] sm:$0xff]
      %v348 = vld [vmem:[%s344 + $0x18] sm:$0xff]
      %v349 = vmul.f32 %v327, %v345
      %v350 = vmul.f32 %v328, %v346
      %v351 = vmul.f32 %v329, %v347
      %v352 = vmul.f32 %v330, %v348
      %v353 = vadd.f32 %v323, %v349
      %v354 = vadd.f32 %v324, %v350
      %v355 = vadd.f32 %v325, %v351
      %v356 = vadd.f32 %v326, %v352
      %s357 = scalar_lea.vmem %s195, 32
      %v358 = vld [vmem:[%s357] sm:$0xff]
      %v359 = vld [vmem:[%s357 + $0x8] sm:$0xff]
      %v360 = vld [vmem:[%s357 + $0x10] sm:$0xff]
      %v361 = vld [vmem:[%s357 + $0x18] sm:$0xff]
      %v362 = vmul.f32 %v358, %v219
      %v363 = vmul.f32 %v359, %v220
      %v364 = vmul.f32 %v360, %v221
      %v365 = vmul.f32 %v361, %v222
      %v366 = vmul.f32 %v362, %v228
      %v367 = vmul.f32 %v363, %v229
      %v368 = vmul.f32 %v364, %v230
      %v369 = vmul.f32 %v365, %v231
      %s370 = scalar_lea.vmem %s204, 128
      %v371 = vld [vmem:[%s370] sm:$0xff]
      %v372 = vld [vmem:[%s370 + $0x8] sm:$0xff]
      %v373 = vld [vmem:[%s370 + $0x10] sm:$0xff]
      %v374 = vld [vmem:[%s370 + $0x18] sm:$0xff]
      %v375 = vmul.f32 %v366, %v371
      %v376 = vmul.f32 %v367, %v372
      %v377 = vmul.f32 %v368, %v373
      %v378 = vmul.f32 %v369, %v374
      %v379 = vadd.f32 %v340, %v375
      %v380 = vadd.f32 %v341, %v376
      %v381 = vadd.f32 %v342, %v377
      %v382 = vadd.f32 %v343, %v378
      %s383 = scalar_lea.vmem %s204, 384
      %v384 = vld [vmem:[%s383] sm:$0xff]
      %v385 = vld [vmem:[%s383 + $0x8] sm:$0xff]
      %v386 = vld [vmem:[%s383 + $0x10] sm:$0xff]
      %v387 = vld [vmem:[%s383 + $0x18] sm:$0xff]
      %v388 = vmul.f32 %v366, %v384
      %v389 = vmul.f32 %v367, %v385
      %v390 = vmul.f32 %v368, %v386
      %v391 = vmul.f32 %v369, %v387
      %v392 = vadd.f32 %v353, %v388
      %v393 = vadd.f32 %v354, %v389
      %v394 = vadd.f32 %v355, %v390
      %v395 = vadd.f32 %v356, %v391
      %v396 = vmul.f32 %v362, %v254
      %v397 = vmul.f32 %v363, %v255
      %v398 = vmul.f32 %v364, %v256
      %v399 = vmul.f32 %v365, %v257
      %s400 = scalar_lea.vmem %s204, 160
      %v401 = vld [vmem:[%s400] sm:$0xff]
      %v402 = vld [vmem:[%s400 + $0x8] sm:$0xff]
      %v403 = vld [vmem:[%s400 + $0x10] sm:$0xff]
      %v404 = vld [vmem:[%s400 + $0x18] sm:$0xff]
      %v405 = vmul.f32 %v396, %v401
      %v406 = vmul.f32 %v397, %v402
      %v407 = vmul.f32 %v398, %v403
      %v408 = vmul.f32 %v399, %v404
      %v409 = vadd.f32 %v379, %v405
      %v410 = vadd.f32 %v380, %v406
      %v411 = vadd.f32 %v381, %v407
      %v412 = vadd.f32 %v382, %v408
      %s413 = scalar_lea.vmem %s204, 416
      %v414 = vld [vmem:[%s413] sm:$0xff]
      %v415 = vld [vmem:[%s413 + $0x8] sm:$0xff]
      %v416 = vld [vmem:[%s413 + $0x10] sm:$0xff]
      %v417 = vld [vmem:[%s413 + $0x18] sm:$0xff]
      %v418 = vmul.f32 %v396, %v414
      %v419 = vmul.f32 %v397, %v415
      %v420 = vmul.f32 %v398, %v416
      %v421 = vmul.f32 %v399, %v417
      %v422 = vadd.f32 %v392, %v418
      %v423 = vadd.f32 %v393, %v419
      %v424 = vadd.f32 %v394, %v420
      %v425 = vadd.f32 %v395, %v421
      %v426 = vmul.f32 %v358, %v289
      %v427 = vmul.f32 %v359, %v290
      %v428 = vmul.f32 %v360, %v291
      %v429 = vmul.f32 %v361, %v292
      %v430 = vmul.f32 %v426, %v228
      %v431 = vmul.f32 %v427, %v229
      %v432 = vmul.f32 %v428, %v230
      %v433 = vmul.f32 %v429, %v231
      %s434 = scalar_lea.vmem %s204, 192
      %v435 = vld [vmem:[%s434] sm:$0xff]
      %v436 = vld [vmem:[%s434 + $0x8] sm:$0xff]
      %v437 = vld [vmem:[%s434 + $0x10] sm:$0xff]
      %v438 = vld [vmem:[%s434 + $0x18] sm:$0xff]
      %v439 = vmul.f32 %v430, %v435
      %v440 = vmul.f32 %v431, %v436
      %v441 = vmul.f32 %v432, %v437
      %v442 = vmul.f32 %v433, %v438
      %v443 = vadd.f32 %v409, %v439
      %v444 = vadd.f32 %v410, %v440
      %v445 = vadd.f32 %v411, %v441
      %v446 = vadd.f32 %v412, %v442
      %s447 = scalar_lea.vmem %s204, 448
      %v448 = vld [vmem:[%s447] sm:$0xff]
      %v449 = vld [vmem:[%s447 + $0x8] sm:$0xff]
      %v450 = vld [vmem:[%s447 + $0x10] sm:$0xff]
      %v451 = vld [vmem:[%s447 + $0x18] sm:$0xff]
      %v452 = vmul.f32 %v430, %v448
      %v453 = vmul.f32 %v431, %v449
      %v454 = vmul.f32 %v432, %v450
      %v455 = vmul.f32 %v433, %v451
      %v456 = vadd.f32 %v422, %v452
      %v457 = vadd.f32 %v423, %v453
      %v458 = vadd.f32 %v424, %v454
      %v459 = vadd.f32 %v425, %v455
      %v460 = vmul.f32 %v426, %v254
      %v461 = vmul.f32 %v427, %v255
      %v462 = vmul.f32 %v428, %v256
      %v463 = vmul.f32 %v429, %v257
      %s464 = scalar_lea.vmem %s204, 224
      %v465 = vld [vmem:[%s464] sm:$0xff]
      %v466 = vld [vmem:[%s464 + $0x8] sm:$0xff]
      %v467 = vld [vmem:[%s464 + $0x10] sm:$0xff]
      %v468 = vld [vmem:[%s464 + $0x18] sm:$0xff]
      %v469 = vmul.f32 %v460, %v465
      %v470 = vmul.f32 %v461, %v466
      %v471 = vmul.f32 %v462, %v467
      %v472 = vmul.f32 %v463, %v468
      %v473 = vadd.f32 %v443, %v469
      %v474 = vadd.f32 %v444, %v470
      %v475 = vadd.f32 %v445, %v471
      %v476 = vadd.f32 %v446, %v472
      %s477 = scalar_lea.vmem %s204, 480
      %v478 = vld [vmem:[%s477] sm:$0xff]
      %v479 = vld [vmem:[%s477 + $0x8] sm:$0xff]
      %v480 = vld [vmem:[%s477 + $0x10] sm:$0xff]
      %v481 = vld [vmem:[%s477 + $0x18] sm:$0xff]
      %v482 = vmul.f32 %v460, %v478
      %v483 = vmul.f32 %v461, %v479
      %v484 = vmul.f32 %v462, %v480
      %v485 = vmul.f32 %v463, %v481
      %v486 = vadd.f32 %v456, %v482
      %v487 = vadd.f32 %v457, %v483
      %v488 = vadd.f32 %v458, %v484
      %v489 = vadd.f32 %v459, %v485
      %490 = vst [vmem:[%s213] sm:$0xff] %v473
      %491 = vst [vmem:[%s213 + $0x8] sm:$0xff] %v474
      %492 = vst [vmem:[%s213 + $0x10] sm:$0xff] %v475
      %493 = vst [vmem:[%s213 + $0x18] sm:$0xff] %v476
      %s494 = scalar_lea.vmem %s213, 32
      %495 = vst [vmem:[%s494] sm:$0xff] %v486
      %496 = vst [vmem:[%s494 + $0x8] sm:$0xff] %v487
      %497 = vst [vmem:[%s494 + $0x10] sm:$0xff] %v488
      %498 = vst [vmem:[%s494 + $0x18] sm:$0xff] %v489
      %p499 = scmp.lt.s32.totalorder %s17, 1
      %s500 = scalar_select %p499, %s17, 1
      %p501 = scmp.lt.s32.totalorder %s18, 0
      %s502 = scalar_select %p501, %s18, 0
      %s503 = smul.addr %s502, 4
      %s504 = smul.addr %s500, 8
      %s505 = sadd.s32 %s503, %s504
      %s506 = smul.addr %s505, 8
      %s507 = scalar_lea.vmem %s2, %s506
      // Predicated region
      $region29: #{spatial_transformer.3} parent=27 // pred_check
        %p508 = pneg %p101
      $region30: #{spatial_transformer.3} parent=27 // pred_check_branch
        %510 = sbr.rel (%p508) target = $region32
      $region31: #{spatial_transformer.3} parent=27 // pred_region
        _
      $region32: #{spatial_transformer.3} parent=27 // pred_fallthru
        _
    $region28: #{spatial_transformer.3} parent=5 // pred_fallthru
      _
    %p511 = scmp.le.s32.totalorder 2, %s8
    // Predicated region
    $region33: #{spatial_transformer.3} parent=5 // pred_check
      %p512 = pneg %p511
    $region34: #{spatial_transformer.3} parent=5 // pred_check_branch
      %514 = sbr.rel (%p512) target = $region36
    $region35: #{spatial_transformer.3} parent=5 // pred_region
      %s515 = ssub.s32 %s8, 2
      // Predicated region
      $region37: #{spatial_transformer.3} parent=35 // pred_check
        %p516 = pneg %p107
      $region38: #{spatial_transformer.3} parent=35 // pred_check_branch
        %518 = sbr.rel (%p516) target = $region40
      $region39: #{spatial_transformer.3} parent=35 // pred_region
        %p519 = scmp.lt.s32.totalorder %s19, 1
        %s520 = scalar_select %p519, %s19, 1
        %p521 = scmp.lt.s32.totalorder %s20, 0
        %s522 = scalar_select %p521, %s20, 0
        %s523 = smul.addr %s522, 4
        %s524 = smul.addr %s520, 8
        %s525 = sadd.s32 %s523, %s524
        %s526 = smul.addr %s525, 8
        %s527 = scalar_lea.vmem %s2, %s526
      $region40: #{spatial_transformer.3} parent=35 // pred_fallthru
        _
    $region36: #{spatial_transformer.3} parent=5 // pred_fallthru
      _
  $region6: #{spatial_transformer.3} parent=0 // loop_footer
    %s12 = sadd.s32 1, %s8
  $region7: #{spatial_transformer.3} parent=0 // loop_footer_branch
    %7 = sbr.rel target = $region3
  $region8: #{spatial_transformer.3} parent=0 // loop_exit
    _

</llo_original>
